<compile_context>
chip_gen: v6e
topology: v6e:2x2x1
jax: 0.10.0
libtpu: 0.0.40
codegen_flags: <defaults>
</compile_context>

<pallas_src>
import math
from functools import partial

import jax
import jax.numpy as jnp
from jax.experimental import pallas as pl
from jax.experimental.pallas import tpu as pltpu

PLANES = (32, 64, 128, 256, 512, 256, 128, 64, 32)
LEVELS = len(PLANES) // 2  # 4
NUM_HEAD, CH_HEAD = 4, 32
ACT_DTYPE = jnp.bfloat16


def _round_up(x, m):
    return (x + m - 1) // m * m


_IS_V5 = None


def _is_v5():
    global _IS_V5
    if _IS_V5 is None:
        try:
            _IS_V5 = "v5" in jax.devices()[0].device_kind.lower()
        except Exception:  # pragma: no cover
            _IS_V5 = False
    return _IS_V5


# --------------------------------------------------------------------------
# Pallas kernel 1: tiled bf16 matmul with f32 accumulator + bias epilogue
# (1x1 convs, fold/unfold convs, im2col fallback convs)
# --------------------------------------------------------------------------
def _mm_kernel(a_ref, b_ref, bias_ref, o_ref, acc_ref):
    @pl.when(pl.program_id(2) == 0)
    def _():
        acc_ref[...] = jnp.zeros_like(acc_ref)

    acc_ref[...] += jnp.dot(a_ref[...], b_ref[...],
                            preferred_element_type=jnp.float32)

    @pl.when(pl.program_id(2) == pl.num_programs(2) - 1)
    def _():
        o_ref[...] = (acc_ref[...] + bias_ref[...]).astype(o_ref.dtype)


def pallas_matmul(a, b, bias=None, out_dtype=jnp.float32):
    """a:(M,K) @ b:(K,N) + bias:(N,) -> (M,N) out_dtype (bf16 MXU operands)."""
    M, K = a.shape
    _, N = b.shape
    if bias is None:
        bias = jnp.zeros((N,), jnp.float32)
    bias = bias.astype(jnp.float32)

    # Tiny matmuls: launch/padding overhead dwarfs the FLOPs -> plain XLA dot.
    if M < 128 or N < 8 or K < 8:
        out = jnp.dot(a.astype(jnp.float32), b.astype(jnp.float32)) + bias[None, :]
        return out.astype(out_dtype)

    tm = 256 if M % 256 == 0 else 128
    if N < 128:
        tn = N                                  # full-dim block: no N padding
    elif (not _is_v5()) and N % 256 == 0:
        tn = 256                                # 256-lane MXU (v6e/v7x)
    else:
        tn = 128                                # v5e 128x128 MXU
    if K < 256:
        tk = K                                  # full-dim block: no K padding
    elif K % 512 == 0:
        tk = 512
    elif K % 256 == 0:
        tk = 256
    else:
        tk = 128
    Mp, Kp, Np = _round_up(M, tm), _round_up(K, tk), _round_up(N, tn)

    a16 = a.astype(jnp.bfloat16)
    b16 = b.astype(jnp.bfloat16)
    if (Mp, Kp) != (M, K):                      # skip pad copy when aligned
        a16 = jnp.pad(a16, ((0, Mp - M), (0, Kp - K)))
    if (Kp, Np) != (K, N):
        b16 = jnp.pad(b16, ((0, Kp - K), (0, Np - N)))
    bias_p = bias if Np == N else jnp.pad(bias, (0, Np - N))
    bias_p = bias_p.reshape(1, Np)

    out = pl.pallas_call(
        _mm_kernel,
        out_shape=jax.ShapeDtypeStruct((Mp, Np), out_dtype),
        grid_spec=pltpu.PrefetchScalarGridSpec(
            num_scalar_prefetch=0,
            grid=(Mp // tm, Np // tn, Kp // tk),
            in_specs=[
                pl.BlockSpec((tm, tk), lambda i, j, k: (i, k)),
                pl.BlockSpec((tk, tn), lambda i, j, k: (k, j)),
                pl.BlockSpec((1, tn), lambda i, j, k: (0, j)),
            ],
            out_specs=pl.BlockSpec((tm, tn), lambda i, j, k: (i, j)),
            scratch_shapes=[pltpu.VMEM((tm, tn), jnp.float32)],
        ),
        compiler_params=pltpu.CompilerParams(
            dimension_semantics=("parallel", "parallel", "arbitrary")),
    )(a16, b16, bias_p)
    if (Mp, Np) != (M, N):
        out = out[:M, :N]
    return out


# --------------------------------------------------------------------------
# Pallas kernel 2: direct 3x3x3 "same" conv with all 27 taps folded into K.
# One batch item per grid step; the padded volume lives in VMEM as a flat
# (rows, Cin) matrix with 8-aligned plane strides.  Per output z-plane the 27
# shifted row-windows are concatenated into a (Dp^2, 27*Cin) operand and a
# single big-K MXU dot produces the plane; one bf16 store per plane.
# --------------------------------------------------------------------------
def _conv3d27_kernel(x_ref, w_ref, o_ref, *, D, Dp, S8, Dp2, off0):
    # x_ref: (1, R, Cin)      bf16 flat zero-padded volume, plane stride S8 (8-aligned)
    # w_ref: (27*Cin, Cout)   bf16
    # o_ref: (1, D*S8, Cout)  bf16 padded-(y,x)-plane layout (halo cropped in JAX)
    wmat = w_ref[...]

    def zbody(zo, carry):
        zbase = pl.multiple_of(zo * S8, 8)          # aligned plane base
        pieces = []
        for dz in range(3):
            for dy in range(3):
                for dx in range(3):
                    off = off0 + dz * S8 + (dy - 1) * Dp + (dx - 1)
                    pieces.append(x_ref[0, pl.ds(zbase + off, Dp2), :])
        patch = jnp.concatenate(pieces, axis=-1)    # (Dp2, 27*Cin) bf16
        res = jnp.dot(patch, wmat, preferred_element_type=jnp.float32)
        obase = pl.multiple_of(zo * S8, 8)
        o_ref[0, pl.ds(obase, Dp2), :] = res.astype(o_ref.dtype)
        return carry

    jax.lax.fori_loop(0, D, zbody, 0)


@partial(jax.jit, static_argnames=("ks",))
def conv3d_same(x, w, ks):
    """Stride-1 MinkowskiConvolution on the dense grid.  w: (ks^3, Cin, Cout)."""
    B, D, H, Wd, Cin = x.shape
    Cout = w.shape[-1]

    if ks == 3 and D >= 8 and D == H == Wd:
        Dp = D + 2
        Dp2 = Dp * Dp
        S8 = _round_up(Dp2, 8)                       # 8-aligned plane stride
        front = _round_up(Dp + 1, 8)                 # slack for negative shifts
        back = _round_up(Dp + 1, 8)
        R = front + Dp * S8 + back

        xp = jnp.pad(x.astype(jnp.bfloat16),
                     ((0, 0), (1, 1), (1, 1), (1, 1), (0, 0)))
        xp = xp.reshape(B, Dp, Dp2, Cin)
        xp = jnp.pad(xp, ((0, 0), (0, 0), (0, S8 - Dp2), (0, 0)))
        xf = xp.reshape(B, Dp * S8, Cin)
        xf = jnp.pad(xf, ((0, 0), (front, back), (0, 0)))       # (B, R, Cin)
        wk = w.reshape(27 * Cin, Cout).astype(jnp.bfloat16)

        out = pl.pallas_call(
            partial(_conv3d27_kernel, D=D, Dp=Dp, S8=S8, Dp2=Dp2, off0=front),
            out_shape=jax.ShapeDtypeStruct((B, D * S8, Cout), ACT_DTYPE),
            grid_spec=pltpu.PrefetchScalarGridSpec(
                num_scalar_prefetch=0,
                grid=(B,),
                in_specs=[
                    pl.BlockSpec((1, R, Cin), lambda b: (b, 0, 0)),
                    pl.BlockSpec((27 * Cin, Cout), lambda b: (0, 0)),
                ],
                out_specs=pl.BlockSpec((1, D * S8, Cout), lambda b: (b, 0, 0)),
            ),
            compiler_params=pltpu.CompilerParams(
                dimension_semantics=("parallel",)),
        )(xf, wk)
        out = out.reshape(B, D, S8, Cout)[:, :, :Dp2, :]
        out = out.reshape(B, D, Dp, Dp, Cout)[:, :, 1:1 + D, 1:1 + D, :]
        return out

    # Fallback: ks=5 init conv (Cin=3) and tiny low-res volumes (D < 8).
    # The bf16 patches matrix is KB/MB-scale; one big-K MXU matmul is best.
    pad = ks // 2
    xp = jnp.pad(x, ((0, 0), (pad, pad), (pad, pad), (pad, pad), (0, 0)))
    xp = xp.astype(jnp.bfloat16)
    cols = []
    for dz in range(ks):
        for dy in range(ks):
            for dx in range(ks):
                cols.append(xp[:, dz:dz + D, dy:dy + H, dx:dx + Wd, :])
    patches = jnp.concatenate(cols, axis=-1).reshape(B * D * H * Wd, ks ** 3 * Cin)
    out = pallas_matmul(patches, w.reshape(ks ** 3 * Cin, Cout),
                        out_dtype=ACT_DTYPE)
    return out.reshape(B, D, H, Wd, Cout)


# --------------------------------------------------------------------------
# Pallas kernel 3: fully fused GroupNorm (+ scale-shift + SiLU + residual).
# One batch item per grid step, full-P block resident, lane-dense layout
# (P, C) viewed as (P*C/128, 128) for C in {32, 64}.  Group combine is done
# in-kernel via a (L, L) group-membership matmul so mean/var broadcast stays
# in the lane-dense layout with zero reshapes.
# --------------------------------------------------------------------------
def _gn_fused_kernel(x_ref, a_ref, g_ref, b_ref, *rest, act, has_res):
    if has_res:
        res_ref, o_ref = rest
    else:
        (o_ref,) = rest
    x = x_ref[0].astype(jnp.float32)                      # (Pr, L)
    s = jnp.sum(x, axis=0, keepdims=True)                 # (1, L)
    ss = jnp.sum(x * x, axis=0, keepdims=True)
    mean = jnp.dot(s, a_ref[...], preferred_element_type=jnp.float32)
    ex2 = jnp.dot(ss, a_ref[...], preferred_element_type=jnp.float32)
    var = jnp.maximum(ex2 - mean * mean, 0.0)
    inv = jax.lax.rsqrt(var + 1e-5)
    y = (x - mean) * (inv * g_ref[0]) + b_ref[0]
    if act:
        y = y * jax.nn.sigmoid(y)                         # SiLU
    if has_res:
        y = y + res_ref[0].astype(jnp.float32)
    o_ref[0] = y.astype(o_ref.dtype)


def _group_matrix(C, groups, r, count):
    """(L, L) matrix: A[i, j] = [group(i) == group(j)] / (count * C/groups)."""
    cg = C // groups
    gid = jnp.arange(C, dtype=jnp.int32) // cg
    gid = jnp.tile(gid, r)
    return (gid[:, None] == gid[None, :]).astype(jnp.float32) / float(count * cg)


@partial(jax.jit, static_argnames=("groups", "act"))
def groupnorm_fused(x, gamma, beta, scale, shift, residual=None, *,
                    groups, act):
    """x: (B, P, C); gamma/beta: (C,); scale/shift: (B, C); residual: (B,P,C)."""
    B, P, C = x.shape
    r = 128 // C if (C < 128 and 128 % C == 0 and P % (128 // C) == 0) else 1
    L, Pr = r * C, P // r

    xr = x.astype(jnp.bfloat16).reshape(B, Pr, L)
    A = _group_matrix(C, groups, r, P)
    s1 = scale.astype(jnp.float32) + 1.0
    g2 = jnp.tile(gamma[None, :].astype(jnp.float32) * s1, (1, r)).reshape(B, 1, L)
    b2 = jnp.tile(beta[None, :].astype(jnp.float32) * s1
                  + shift.astype(jnp.float32), (1, r)).reshape(B, 1, L)

    args = [xr, A, g2, b2]
    in_specs = [
        pl.BlockSpec((1, Pr, L), lambda b: (b, 0, 0)),
        pl.BlockSpec((L, L), lambda b: (0, 0)),
        pl.BlockSpec((1, 1, L), lambda b: (b, 0, 0)),
        pl.BlockSpec((1, 1, L), lambda b: (b, 0, 0)),
    ]
    has_res = residual is not None
    if has_res:
        args.append(residual.astype(jnp.bfloat16).reshape(B, Pr, L))
        in_specs.append(pl.BlockSpec((1, Pr, L), lambda b: (b, 0, 0)))

    out = pl.pallas_call(
        partial(_gn_fused_kernel, act=act, has_res=has_res),
        out_shape=jax.ShapeDtypeStruct((B, Pr, L), ACT_DTYPE),
        grid_spec=pltpu.PrefetchScalarGridSpec(
            num_scalar_prefetch=0,
            grid=(B,),
            in_specs=in_specs,
            out_specs=pl.BlockSpec((1, Pr, L), lambda b: (b, 0, 0)),
        ),
        compiler_params=pltpu.CompilerParams(
            dimension_semantics=("parallel",)),
    )(*args)
    return out.reshape(B, P, C)


# --------------------------------------------------------------------------
# Pallas kernel 4: per-batch multi-head softmax attention (mid_attn).
# P at the bottleneck is (D/16)^3 (tiny), so a full-P block is safe.
# bf16 MXU dots, f32 softmax, approx reciprocal.
# --------------------------------------------------------------------------
def _attn_kernel(q_ref, kt_ref, v_ref, o_ref, *, num_head, ch_head):
    for h in range(num_head):
        lo = h * ch_head
        qh = q_ref[0, :, lo:lo + ch_head]                 # (P, Dh) bf16, pre-scaled
        khT = kt_ref[0, lo:lo + ch_head, :]               # (Dh, P) bf16
        vh = v_ref[0, :, lo:lo + ch_head]                 # (P, Dh) bf16
        s = jnp.dot(qh, khT, preferred_element_type=jnp.float32)   # (P, P)
        s = s - jnp.max(s, axis=-1, keepdims=True)
        e = jnp.exp(s)
        p = e * pl.reciprocal(jnp.sum(e, axis=-1, keepdims=True), approx=True)
        o_ref[0, :, lo:lo + ch_head] = jnp.dot(
            p.astype(jnp.bfloat16), vh,
            preferred_element_type=jnp.float32).astype(o_ref.dtype)


@partial(jax.jit, static_argnames=("num_head", "ch_head"))
def pallas_attention(q, kt, v, *, num_head, ch_head):
    B, P, HD = q.shape
    io_spec = pl.BlockSpec((1, P, HD), lambda b: (b, 0, 0))
    kt_spec = pl.BlockSpec((1, HD, P), lambda b: (b, 0, 0))
    return pl.pallas_call(
        partial(_attn_kernel, num_head=num_head, ch_head=ch_head),
        out_shape=jax.ShapeDtypeStruct((B, P, HD), ACT_DTYPE),
        grid_spec=pltpu.PrefetchScalarGridSpec(
            num_scalar_prefetch=0,
            grid=(B,),
            in_specs=[io_spec, kt_spec, io_spec],
            out_specs=io_spec,
        ),
        compiler_params=pltpu.CompilerParams(
            dimension_semantics=("parallel",)),
    )(q.astype(jnp.bfloat16), kt.astype(jnp.bfloat16), v.astype(jnp.bfloat16))


# --------------------------------------------------------------------------
# Glue: strided Minkowski conv variants (fold/unfold + Pallas matmul)
# --------------------------------------------------------------------------
@jax.jit
def down_conv(x, w):
    """kernel=2, stride=2 MinkowskiConvolution. w: (8, Cin, Cout)."""
    B, D, _, _, Cin = x.shape
    Cout = w.shape[-1]
    d = D // 2
    xr = x.reshape(B, d, 2, d, 2, d, 2, Cin)
    xr = jnp.transpose(xr, (0, 1, 3, 5, 2, 4, 6, 7)).reshape(B * d * d * d, 8 * Cin)
    out = pallas_matmul(xr, w.reshape(8 * Cin, Cout), out_dtype=ACT_DTYPE)
    return out.reshape(B, d, d, d, Cout)


@jax.jit
def up_conv(x, w):
    """kernel=2, stride=2 MinkowskiConvolutionTranspose. w: (8, Cin, Cout)."""
    B, d, _, _, Cin = x.shape
    Cout = w.shape[-1]
    wm = jnp.transpose(w, (1, 0, 2)).reshape(Cin, 8 * Cout)
    out = pallas_matmul(x.reshape(B * d * d * d, Cin), wm, out_dtype=ACT_DTYPE)
    out = out.reshape(B, d, d, d, 2, 2, 2, Cout)
    out = jnp.transpose(out, (0, 1, 4, 2, 5, 3, 6, 7))
    return out.reshape(B, 2 * d, 2 * d, 2 * d, Cout)


@jax.jit
def conv1x1(x, w, b=None):
    B, D, H, W_, Cin = x.shape
    out = pallas_matmul(x.reshape(-1, Cin), w, b, out_dtype=ACT_DTYPE)
    return out.reshape(B, D, H, W_, -1)


# --------------------------------------------------------------------------
# Module forward functions
# --------------------------------------------------------------------------
def conv_block_fwd(x, p, ks, scale_shift=None, act=True, groups=8, residual=None):
    y = conv3d_same(x, p["w"], ks)                       # bf16
    B, D, H, W_, C = y.shape
    if scale_shift is None:
        scale = jnp.zeros((B, C), jnp.float32)
        shift = jnp.zeros((B, C), jnp.float32)
    else:
        scale, shift = scale_shift
    res_flat = None if residual is None else residual.reshape(B, D * H * W_, C)
    yf = groupnorm_fused(y.reshape(B, D * H * W_, C), p["gamma"], p["beta"],
                         scale, shift, res_flat, groups=groups, act=act)
    return yf.reshape(B, D, H, W_, C)


def resnet_fwd(x, p, time_emb):
    scale_shift = None
    if time_emb is not None:
        t = jax.nn.silu(time_emb)
        t = pallas_matmul(t, p["mlp_w"], p["mlp_b"])     # tiny -> plain dot
        co = t.shape[1] // 2
        scale_shift = (t[:, :co], t[:, co:])
    h = conv_block_fwd(x, p["b1"], 3, scale_shift=scale_shift)
    if "res_w" in p:
        r = conv1x1(x, p["res_w"], p["res_b"])
    else:
        r = x
    # residual add fused into block2's GN/SiLU kernel
    return conv_block_fwd(h, p["b2"], 3, residual=r)


def attention_fwd(x, p):
    B, D, H, W_, C = x.shape
    P = D * H * W_
    xf = x.reshape(B, P, C)
    zeros = jnp.zeros((B, C), jnp.float32)
    nx = groupnorm_fused(xf, p["norm_gamma"], p["norm_beta"], zeros, zeros,
                         groups=1, act=False)
    qkv = pallas_matmul(nx.reshape(B * P, C), p["wqkv"])        # (B*P, 3*H*Dh)
    HD = NUM_HEAD * CH_HEAD
    q = (qkv[:, :HD] * (CH_HEAD ** -0.5)).reshape(B, P, HD).astype(jnp.bfloat16)
    k = qkv[:, HD:2 * HD].reshape(B, P, HD).astype(jnp.bfloat16)
    v = qkv[:, 2 * HD:].reshape(B, P, HD).astype(jnp.bfloat16)
    o = pallas_attention(q, jnp.swapaxes(k, 1, 2), v,
                         num_head=NUM_HEAD, ch_head=CH_HEAD)
    out = pallas_matmul(o.reshape(B * P, HD).astype(jnp.float32),
                        p["wout"], p["bout"])
    out = (out + xf.reshape(B * P, C).astype(jnp.float32)).astype(ACT_DTYPE)
    return out.reshape(B, D, H, W_, C)


def time_mlp_fwd(p, times):
    tc4 = p["w1"].shape[0]
    half = tc4 // 2
    freqs = jnp.exp(jnp.arange(half, dtype=jnp.float32) * (-math.log(1000.0) / half))
    emb = times.astype(jnp.float32)[:, None] * freqs[None, :]
    emb = jnp.concatenate([jnp.sin(emb), jnp.cos(emb)], axis=-1)   # (B, tc//4)
    h = pallas_matmul(emb, p["w1"], p["b1"])                       # tiny -> dot
    h = jax.nn.gelu(h, approximate=False)
    return pallas_matmul(h, p["w2"], p["b2"])


def minkunet_forward(params, x, times):
    time_emb = time_mlp_fwd(params["time_mlp"], times)
    x = conv_block_fwd(x, params["init_conv"], 5)
    stack = [x]
    # encoder
    for i in range(LEVELS + 1):
        for j in range(2):
            x = resnet_fwd(x, params["enc"][i][j], time_emb)
            stack.append(x)            # attn is Identity ('N' everywhere)
        if i < LEVELS:
            x = down_conv(x, params["downs"][i])
    # middle
    x = resnet_fwd(x, params["mid1"], time_emb)
    x = attention_fwd(x, params["mid_attn"])
    x = resnet_fwd(x, params["mid2"], time_emb)
    # decoder
    for li in range(len(PLANES) - LEVELS):
        for j in range(2):
            x = jnp.concatenate([x, stack.pop()], axis=-1)   # ME.cat
            x = resnet_fwd(x, params["dec"][li][j], time_emb)
        if li < len(params["ups"]):
            x = up_conv(x, params["ups"][li])
    x = jnp.concatenate([x, stack.pop()], axis=-1)
    assert not stack
    x = resnet_fwd(x, params["final_block"], time_emb)
    B, D, H, W_, C = x.shape
    out = pallas_matmul(x.reshape(-1, C).astype(jnp.float32), params["final_w"])
    return out.reshape(B, D, H, W_, -1)


# --------------------------------------------------------------------------
# Deterministic parameter initialization
# --------------------------------------------------------------------------
class _KeyGen:
    def __init__(self, key):
        self.key = key

    def __call__(self):
        self.key, k = jax.random.split(self.key)
        return k


def init_params(key, in_ch, out_ch, tc):
    kg = _KeyGen(key)

    def nrm(shape, fan_in):
        return jax.random.normal(kg(), shape, jnp.float32) / math.sqrt(fan_in)

    def conv_block_p(ci, co, ks):
        return {"w": nrm((ks ** 3, ci, co), ks ** 3 * ci),
                "gamma": jnp.ones((co,), jnp.float32),
                "beta": jnp.zeros((co,), jnp.float32)}

    def resnet_p(ci, co):
        p = {"mlp_w": nrm((tc, 2 * co), tc),
             "mlp_b": jnp.zeros((2 * co,), jnp.float32),
             "b1": conv_block_p(ci, co, 3),
             "b2": conv_block_p(co, co, 3)}
        if ci != co:
            p["res_w"] = nrm((ci, co), ci)
            p["res_b"] = jnp.zeros((co,), jnp.float32)
        return p

    mid = PLANES[LEVELS]
    params = {
        "time_mlp": {"w1": nrm((tc // 4, tc), tc // 4),
                     "b1": jnp.zeros((tc,), jnp.float32),
                     "w2": nrm((tc, tc), tc),
                     "b2": jnp.zeros((tc,), jnp.float32)},
        "init_conv": conv_block_p(in_ch, PLANES[0], 5),
        "enc": [[resnet_p(PLANES[i], PLANES[i]) for _ in range(2)]
                for i in range(LEVELS + 1)],
        "downs": [nrm((8, PLANES[i], PLANES[i + 1]), 8 * PLANES[i])
                  for i in range(LEVELS)],
        "mid1": resnet_p(mid, mid),
        "mid_attn": {"norm_gamma": jnp.ones((mid,), jnp.float32),
                     "norm_beta": jnp.zeros((mid,), jnp.float32),
                     "wqkv": nrm((mid, 3 * NUM_HEAD * CH_HEAD), mid),
                     "wout": nrm((NUM_HEAD * CH_HEAD, mid), NUM_HEAD * CH_HEAD),
                     "bout": jnp.zeros((mid,), jnp.float32)},
        "mid2": resnet_p(mid, mid),
        "dec": [[resnet_p(PLANES[i] + PLANES[len(PLANES) - 1 - i], PLANES[i])
                 for _ in range(2)]
                for i in range(LEVELS, len(PLANES))],
        "ups": [nrm((8, PLANES[i], PLANES[i + 1]), PLANES[i])
                for i in range(LEVELS, len(PLANES) - 1)],
        "final_block": resnet_p(PLANES[-1] + PLANES[0], PLANES[-1]),
        "final_w": nrm((PLANES[-1], out_ch), PLANES[-1]),
    }
    return params


# --------------------------------------------------------------------------
if __name__ == "__main__":
    B, D = 2, 16                      # D must be divisible by 2**LEVELS = 16
    in_ch, out_ch, time_channels = 3, 3, 32

    key = jax.random.PRNGKey(0)
    k_params, k_x, k_t = jax.random.split(key, 3)

    params = init_params(k_params, in_ch, out_ch, time_channels)
    x = jax.random.normal(k_x, (B, D, D, D, in_ch), jnp.float32)
    times = jax.random.uniform(k_t, (B,), jnp.float32) * 1000.0

    out = minkunet_forward(params, x, times)
    out = jax.block_until_ready(out)

    assert out.shape == (B, D, D, D, out_ch), out.shape
    assert bool(jnp.all(jnp.isfinite(out)))
    print("KERNEL_OK")
</pallas_src>

<mosaic_0001>
module attributes {stable_mosaic.version = 11 : i64} {
  func.func @_mm_kernel(%arg0: i32, %arg1: i32, %arg2: i32, %arg3: memref<256x128xbf16, #tpu.memory_space<vmem>>, %arg4: memref<128x32xbf16, #tpu.memory_space<vmem>>, %arg5: memref<1x32xf32, #tpu.memory_space<vmem>>, %arg6: memref<256x32xbf16, #tpu.memory_space<vmem>>, %arg7: memref<256x32xf32, #tpu.memory_space<vmem>>) attributes {dimension_semantics = [#tpu.dimension_semantics<parallel>, #tpu.dimension_semantics<parallel>, #tpu.dimension_semantics<arbitrary>], iteration_bounds = array<i64: 32, 1, 3>, scalar_prefetch = 0 : i64, scratch_operands = 1 : i64, tpu.core_type = #tpu.core_type<tc>, window_params = [{transform_indices = @transform_0, window_bounds = array<i64: 256, 128>}, {transform_indices = @transform_1, window_bounds = array<i64: 128, 32>}, {transform_indices = @transform_2, window_bounds = array<i64: 1, 32>}, {transform_indices = @transform_3, window_bounds = array<i64: 256, 32>}]} {
    %c0_i32 = arith.constant 0 : i32
    %0 = arith.cmpi eq, %arg2, %c0_i32 : i32
    %1 = arith.extui %0 : i1 to i32
    %c0_i32_0 = arith.constant 0 : i32
    %2 = arith.cmpi ne, %1, %c0_i32_0 : i32
    scf.if %2 {
      %cst_9 = arith.constant 0.000000e+00 : f32
      %12 = vector.broadcast %cst_9 : f32 to vector<256x32xf32>
      %c0_10 = arith.constant 0 : index
      %c0_11 = arith.constant 0 : index
      %13 = vector.load %arg7[%c0_10, %c0_11] : memref<256x32xf32, #tpu.memory_space<vmem>>, vector<256x32xf32>
      tpu.vector_store %arg7[%c0_10, %c0_11], %12 {strides = array<i32>} : memref<256x32xf32, #tpu.memory_space<vmem>>, vector<256x32xf32>,
    } else {
    }
    %c0 = arith.constant 0 : index
    %c0_1 = arith.constant 0 : index
    %3 = vector.load %arg7[%c0, %c0_1] : memref<256x32xf32, #tpu.memory_space<vmem>>, vector<256x32xf32>
    %c0_2 = arith.constant 0 : index
    %c0_3 = arith.constant 0 : index
    %4 = vector.load %arg3[%c0_2, %c0_3] : memref<256x128xbf16, #tpu.memory_space<vmem>>, vector<256x128xbf16>
    %c0_4 = arith.constant 0 : index
    %c0_5 = arith.constant 0 : index
    %5 = vector.load %arg4[%c0_4, %c0_5] : memref<128x32xbf16, #tpu.memory_space<vmem>>, vector<128x32xbf16>
    %cst = arith.constant dense<0.000000e+00> : vector<256x32xf32>
    %6 = tpu.matmul %4, %5, %cst {dimension_numbers = #tpu.dot_dimension_numbers<[1], [0], [0], [1], [0, 0, 1, 1], [], []>} : vector<256x128xbf16>, vector<128x32xbf16>, vector<256x32xf32> -> vector<256x32xf32>
    %7 = arith.addf %3, %6 : vector<256x32xf32>
    %c0_6 = arith.constant 0 : index
    %c0_7 = arith.constant 0 : index
    %8 = vector.load %arg7[%c0_6, %c0_7] : memref<256x32xf32, #tpu.memory_space<vmem>>, vector<256x32xf32>
    tpu.vector_store %arg7[%c0_6, %c0_7], %7 {strides = array<i32>} : memref<256x32xf32, #tpu.memory_space<vmem>>, vector<256x32xf32>,
    %c2_i32 = arith.constant 2 : i32
    %9 = arith.cmpi eq, %arg2, %c2_i32 : i32
    %10 = arith.extui %9 : i1 to i32
    %c0_i32_8 = arith.constant 0 : i32
    %11 = arith.cmpi ne, %10, %c0_i32_8 : i32
    scf.if %11 {
      %c0_9 = arith.constant 0 : index
      %c0_10 = arith.constant 0 : index
      %12 = vector.load %arg7[%c0_9, %c0_10] : memref<256x32xf32, #tpu.memory_space<vmem>>, vector<256x32xf32>
      %c0_11 = arith.constant 0 : index
      %c0_12 = arith.constant 0 : index
      %13 = vector.load %arg5[%c0_11, %c0_12] : memref<1x32xf32, #tpu.memory_space<vmem>>, vector<1x32xf32>
      %14 = vector.broadcast %13 : vector<1x32xf32> to vector<256x32xf32>
      %15 = arith.addf %12, %14 : vector<256x32xf32>
      %16 = arith.truncf %15 : vector<256x32xf32> to vector<256x32xbf16>
      %c0_13 = arith.constant 0 : index
      %c0_14 = arith.constant 0 : index
      %17 = vector.load %arg6[%c0_13, %c0_14] : memref<256x32xbf16, #tpu.memory_space<vmem>>, vector<256x32xbf16>
      tpu.vector_store %arg6[%c0_13, %c0_14], %16 {strides = array<i32>} : memref<256x32xbf16, #tpu.memory_space<vmem>>, vector<256x32xbf16>,
    } else {
    }
    return
  }
  func.func @transform_0(%arg0: i32, %arg1: i32, %arg2: i32) -> (i32, i32) {
    %c0_i32 = arith.constant 0 : i32
    return %arg0, %arg2 : i32, i32
  }
  func.func @transform_1(%arg0: i32, %arg1: i32, %arg2: i32) -> (i32, i32) {
    %c0_i32 = arith.constant 0 : i32
    return %arg2, %arg1 : i32, i32
  }
  func.func @transform_2(%arg0: i32, %arg1: i32, %arg2: i32) -> (i32, i32) {
    %c0_i32 = arith.constant 0 : i32
    %c0_i32_0 = arith.constant 0 : i32
    return %c0_i32, %arg1 : i32, i32
  }
  func.func @transform_3(%arg0: i32, %arg1: i32, %arg2: i32) -> (i32, i32) {
    %c0_i32 = arith.constant 0 : i32
    return %arg0, %arg1 : i32, i32
  }
}

</mosaic_0001>

<llo_original>
// kernel: conv3d_same.1
$region0: #{conv3d_same.1}
  #allocation0 [shape = 'u32[]', space=smem, size = 0x4, offset = 0x4, fixed_abs, tag = 'smem constant byte address 0x4 - core index']
  #allocation1 [shape = 'u32[144,128]{1,0:T(1,128)}', space=vmem, size = 0x12000, scoped, tag = 'internal scratch']
  #allocation2 [shape = 'f32[256,32]{1,0:T(8,128)}', space=vmem, size = 0x20000, scoped, tag = 'scratch operand']
  %s0 = inlined_call_operand.vmem [shape: bf16[8192,384], index: 0, kind: input, shape index: {}]
  %s1 = inlined_call_operand.vmem [shape: bf16[384,32], index: 1, kind: input, shape index: {}]
  %s2 = inlined_call_operand.vmem [shape: f32[1,32], index: 2, kind: input, shape index: {}]
  %s3 = inlined_call_operand.hbm [shape: bf16[8192,32], index: 3, kind: output, shape index: {}]
  %s4 = sld [smem:[#allocation0]]
  $region94: #{conv3d_same.1} parent=0
    _
  %s6 = ssub.s32 1, %s4
  %s7 = scalar_select 0, %s6, %s4
  $region1: #{conv3d_same.1} parent=0
    #allocation3 [shape = 'u8[131072]{0}', space=vmem, size = 0x20000, scoped, tag = 'input window, operand 0']
    #allocation4 [shape = 'u8[131072]{0}', space=vmem, size = 0x20000, scoped, tag = 'output window, operand 0']
    #allocation5 [shape = 's32[2]{0}', space=sflag, size = 0x8, scoped, tag = 'scoped memory for conv3d_same.1']
    %8 = vsyncpa [#allocation5], 0
    %s9 = scalar_lea.sflag [#allocation5], 1
    %10 = vsyncpa %s9, 0
    loop: start=0, step=1, limit=98
    $region2: #{conv3d_same.1} parent=1 // loop_pre_header
      _
    $region3: #{conv3d_same.1} parent=1 // loop_header
      %s12 = sphi 0, %s16
      %p13 = scmp.ge.s32.totalorder %s12, 98
      %s19 = sphi 0, %s38
      %s20 = sphi 0, %s34
      %s21 = sphi 0, %s30
      %s22 = sphi 0, %s19
      %s23 = sphi 0, %s20
      %s24 = sphi 0, %s21
      %s25 = sphi 0, %s22
      %s26 = sphi 0, %s23
      %s27 = sphi 0, %s24
      %s43 = sphi 0, %s45
      %s46 = sphi 0, %s43
      %s47 = sphi 0, %s46
      %s63 = sphi 0, %s47
      %s71 = sphi 0, %s73
      %s74 = sphi 0, %s71
      %s75 = sphi 0, %s74
      %s91 = sphi 0, %s75
      %s97 = sphi 0, %s99
      %s100 = sphi 0, %s97
      %s101 = sphi 0, %s100
      %s117 = sphi 0, %s101
      %s125 = sphi 0, %s127
      %s128 = sphi 0, %s125
      %s129 = sphi 0, %s128
      %s145 = sphi 0, %s129
    $region4: #{conv3d_same.1} parent=1 // loop_header_branch
      %15 = sbr.rel (%p13) target = $region8
    $region5: #{conv3d_same.1} parent=1 // loop_body
      %s17 = ssub.s32 %s12, 1
      %s18 = ssub.s32 %s12, 2
      %s28 = sadd.s32 1, %s21
      %p29 = scmp.ge.s32.totalorder %s28, 3
      %s30 = scalar_select %p29, 0, %s28
      %s31 = sadd.s32 1, %s20
      %s32 = scalar_select %p29, %s31, %s20
      %p33 = scmp.ge.s32.totalorder %s32, 1
      %s34 = scalar_select %p33, 0, %s32
      %s35 = sadd.s32 1, %s19
      %s36 = scalar_select %p33, %s35, %s19
      %p37 = scmp.ge.s32.totalorder %s36, 32
      %s38 = scalar_select %p37, 0, %s36
      %s39 = ssub.s32 %s19, %s38
      %s40 = ssub.s32 %s21, %s30
      %s41 = sor.u32 %s39, %s40
      %p42 = scmp.eq.s32.totalorder %s41, 0
      %s44 = sadd.s32 %s43, 1
      %s45 = scalar_select %p42, %s43, %s44
      %p48 = pneg %p42
      %p49 = scmp.eq.s32.totalorder %s12, 95
      %p50 = por %p48, %p49
      %p51 = scmp.ne.s32.totalorder %s43, %s46
      %p52 = scmp.eq.s32.totalorder %s12, 0
      %p53 = por %p51, %p52
      %p54 = scmp.ne.s32.totalorder %s43, %s46
      %p55 = scmp.eq.s32.totalorder %s17, 95
      %p56 = por %p54, %p55
      %p57 = scmp.ne.s32.totalorder %s46, %s47
      %p58 = scmp.eq.s32.totalorder %s17, 0
      %p59 = por %p57, %p58
      %p60 = scmp.ne.s32.totalorder %s46, %s47
      %p61 = scmp.eq.s32.totalorder %s18, 95
      %p62 = por %p60, %p61
      %p64 = scmp.ne.s32.totalorder %s47, %s63
      %p65 = scmp.eq.s32.totalorder %s18, 0
      %p66 = por %p64, %p65
      %s67 = ssub.s32 %s21, %s30
      %s68 = ssub.s32 %s20, %s34
      %s69 = sor.u32 %s67, %s68
      %p70 = scmp.eq.s32.totalorder %s69, 0
      %s72 = sadd.s32 %s71, 1
      %s73 = scalar_select %p70, %s71, %s72
      %p76 = pneg %p70
      %p77 = scmp.eq.s32.totalorder %s12, 95
      %p78 = por %p76, %p77
      %p79 = scmp.ne.s32.totalorder %s71, %s74
      %p80 = scmp.eq.s32.totalorder %s12, 0
      %p81 = por %p79, %p80
      %p82 = scmp.ne.s32.totalorder %s71, %s74
      %p83 = scmp.eq.s32.totalorder %s17, 95
      %p84 = por %p82, %p83
      %p85 = scmp.ne.s32.totalorder %s74, %s75
      %p86 = scmp.eq.s32.totalorder %s17, 0
      %p87 = por %p85, %p86
      %p88 = scmp.ne.s32.totalorder %s74, %s75
      %p89 = scmp.eq.s32.totalorder %s18, 95
      %p90 = por %p88, %p89
      %p92 = scmp.ne.s32.totalorder %s75, %s91
      %p93 = scmp.eq.s32.totalorder %s18, 0
      %p94 = por %p92, %p93
      %s95 = ssub.s32 %s20, %s34
      %p96 = scmp.eq.s32.totalorder %s95, 0
      %s98 = sadd.s32 %s97, 1
      %s99 = scalar_select %p96, %s97, %s98
      %p102 = pneg %p96
      %p103 = scmp.eq.s32.totalorder %s12, 95
      %p104 = por %p102, %p103
      %p105 = scmp.ne.s32.totalorder %s97, %s100
      %p106 = scmp.eq.s32.totalorder %s12, 0
      %p107 = por %p105, %p106
      %p108 = scmp.ne.s32.totalorder %s97, %s100
      %p109 = scmp.eq.s32.totalorder %s17, 95
      %p110 = por %p108, %p109
      %p111 = scmp.ne.s32.totalorder %s100, %s101
      %p112 = scmp.eq.s32.totalorder %s17, 0
      %p113 = por %p111, %p112
      %p114 = scmp.ne.s32.totalorder %s100, %s101
      %p115 = scmp.eq.s32.totalorder %s18, 95
      %p116 = por %p114, %p115
      %p118 = scmp.ne.s32.totalorder %s101, %s117
      %p119 = scmp.eq.s32.totalorder %s18, 0
      %p120 = por %p118, %p119
      %s121 = ssub.s32 %s19, %s38
      %s122 = ssub.s32 %s20, %s34
      %s123 = sor.u32 %s121, %s122
      %p124 = scmp.eq.s32.totalorder %s123, 0
      %s126 = sadd.s32 %s125, 1
      %s127 = scalar_select %p124, %s125, %s126
      %p130 = pneg %p124
      %p131 = scmp.eq.s32.totalorder %s12, 95
      %p132 = por %p130, %p131
      %p133 = scmp.ne.s32.totalorder %s125, %s128
      %p134 = scmp.eq.s32.totalorder %s12, 0
      %p135 = por %p133, %p134
      %p136 = scmp.ne.s32.totalorder %s125, %s128
      %p137 = scmp.eq.s32.totalorder %s17, 95
      %p138 = por %p136, %p137
      %p139 = scmp.ne.s32.totalorder %s128, %s129
      %p140 = scmp.eq.s32.totalorder %s17, 0
      %p141 = por %p139, %p140
      %p142 = scmp.ne.s32.totalorder %s128, %s129
      %p143 = scmp.eq.s32.totalorder %s18, 95
      %p144 = por %p142, %p143
      %p146 = scmp.ne.s32.totalorder %s129, %s145
      %p147 = scmp.eq.s32.totalorder %s18, 0
      %p148 = por %p146, %p147
      %p149 = scmp.le.s32.totalorder 1, %s12
      %p150 = scmp.lt.s32.totalorder %s12, 97
      %p151 = pnand %p149, %p150
      %p152 = pneg %p151
      // Predicated region
      $region9: #{conv3d_same.1} parent=5 // pred_check
        _
      $region10: #{conv3d_same.1} parent=5 // pred_check_branch
        %154 = sbr.rel (%p151) target = $region12
      $region11: #{conv3d_same.1} parent=5 // pred_region
        %s155 = ssub.s32 %s12, 1
        // Predicated region
        $region13: #{conv3d_same.1} parent=11 // pred_check
          %p156 = pneg %p113
        $region14: #{conv3d_same.1} parent=11 // pred_check_branch
          %158 = sbr.rel (%p156) target = $region16
        $region15: #{conv3d_same.1} parent=11 // pred_region
          %p159 = scmp.lt.s32.totalorder %s23, 0
          %s160 = scalar_select %p159, %s23, 0
          %s161 = scalar_lea.vmem %s2, %s160
        $region16: #{conv3d_same.1} parent=11 // pred_fallthru
          _
      $region12: #{conv3d_same.1} parent=5 // pred_fallthru
        _
      %p162 = scmp.lt.s32.totalorder %s12, 96
      // Predicated region
      $region17: #{conv3d_same.1} parent=5 // pred_check
        %p163 = pneg %p162
      $region18: #{conv3d_same.1} parent=5 // pred_check_branch
        %165 = sbr.rel (%p163) target = $region20
      $region19: #{conv3d_same.1} parent=5 // pred_region
        // Predicated region
        $region21: #{conv3d_same.1} parent=19 // pred_check
          %p166 = pneg %p53
        $region22: #{conv3d_same.1} parent=19 // pred_check_branch
          %168 = sbr.rel (%p166) target = $region24
        $region23: #{conv3d_same.1} parent=19 // pred_region
          %s169 = sand.u32 %s43, 1
          %s170 = sand.u32 %s43, 1
          %s171 = smul.addr %s170, 128
          %s172 = scalar_lea.vmem [#allocation3], %s171
          %s173 = smul.u32 32, %s19
          %s174 = smul.addr %s173, 3
          %s175 = sadd.s32 %s21, %s174
          %s176 = smul.addr %s175, 4
          %s177 = scalar_lea.vmem %s0, %s176
          // Predicated region
          $region25: #{conv3d_same.1} parent=23 // pred_check
            _
          $region26: #{conv3d_same.1} parent=23 // pred_check_branch
            %179 = sbr.rel (0) target = $region28
          $region27: #{conv3d_same.1} parent=23 // pred_region
            // Predicated region
            $region29: #{conv3d_same.1} parent=27 // pred_check
              _
            $region30: #{conv3d_same.1} parent=27 // pred_check_branch
              %181 = sbr.rel target = $region32
            $region31: #{conv3d_same.1} parent=27 // pred_region
              // Predicated region
              $region44: #{conv3d_same.1} parent=31 // pred_check
                _
              $region45: #{conv3d_same.1} parent=31 // pred_check_branch
                %259 = sbr.rel (0) target = $region47
              $region46: #{conv3d_same.1} parent=31 // pred_region
                loop: start=0, step=1, limit=1
                $region48: #{conv3d_same.1} parent=46 // loop_pre_header
                  _
                $region49: #{conv3d_same.1} parent=46 // loop_header
                  %s261 = sphi 0, %s265
                  %p262 = scmp.ge.s32.totalorder %s261, 1
                  %s266 = sphi %s177, %s177
                  %s267 = sphi %s172, %s172
                $region50: #{conv3d_same.1} parent=46 // loop_header_branch
                  %264 = sbr.rel (%p262) target = $region54
                $region51: #{conv3d_same.1} parent=46 // loop_body
                  _
                $region52: #{conv3d_same.1} parent=46 // loop_footer
                  %s265 = sadd.s32 1, %s261
                $region53: #{conv3d_same.1} parent=46 // loop_footer_branch
                  %260 = sbr.rel target = $region49
                $region54: #{conv3d_same.1} parent=46 // loop_exit
                  _
                %s269 = ssub.s32 16, 1
                loop: start=0, step=1, limit=1
                $region55: #{conv3d_same.1} parent=46 // loop_pre_header
                  _
                $region56: #{conv3d_same.1} parent=46 // loop_header
                  %s271 = sphi 0, %s275
                  %p272 = scmp.ge.s32.totalorder %s271, 1
                  %s276 = sphi %s177, %s177
                  %s277 = sphi %s172, %s172
                $region57: #{conv3d_same.1} parent=46 // loop_header_branch
                  %274 = sbr.rel (%p272) target = $region61
                $region58: #{conv3d_same.1} parent=46 // loop_body
                  %v278 = vld [vmem:[%s276] sm:%s269]
                  %279 = vst [vmem:[%s277] sm:%s269] %v278
                  %v280 = vld [vmem:[%s276 + $0xc] sm:%s269]
                  %281 = vst [vmem:[%s277 + $0x4] sm:%s269] %v280
                  %v282 = vld [vmem:[%s276 + $0x18] sm:%s269]
                  %283 = vst [vmem:[%s277 + $0x8] sm:%s269] %v282
                  %v284 = vld [vmem:[%s276 + $0x24] sm:%s269]
                  %285 = vst [vmem:[%s277 + $0xc] sm:%s269] %v284
                  %v286 = vld [vmem:[%s276 + $0x30] sm:%s269]
                  %287 = vst [vmem:[%s277 + $0x10] sm:%s269] %v286
                  %v288 = vld [vmem:[%s276 + $0x3c] sm:%s269]
                  %289 = vst [vmem:[%s277 + $0x14] sm:%s269] %v288
                  %v290 = vld [vmem:[%s276 + $0x48] sm:%s269]
                  %291 = vst [vmem:[%s277 + $0x18] sm:%s269] %v290
                  %v292 = vld [vmem:[%s276 + $0x54] sm:%s269]
                  %293 = vst [vmem:[%s277 + $0x1c] sm:%s269] %v292
                  %v294 = vld [vmem:[%s276 + $0x60] sm:%s269]
                  %295 = vst [vmem:[%s277 + $0x20] sm:%s269] %v294
                  %v296 = vld [vmem:[%s276 + $0x6c] sm:%s269]
                  %297 = vst [vmem:[%s277 + $0x24] sm:%s269] %v296
                  %v298 = vld [vmem:[%s276 + $0x78] sm:%s269]
                  %299 = vst [vmem:[%s277 + $0x28] sm:%s269] %v298
                  %v300 = vld [vmem:[%s276 + $0x84] sm:%s269]
                  %301 = vst [vmem:[%s277 + $0x2c] sm:%s269] %v300
                  %v302 = vld [vmem:[%s276 + $0x90] sm:%s269]
                  %303 = vst [vmem:[%s277 + $0x30] sm:%s269] %v302
                  %v304 = vld [vmem:[%s276 + $0x9c] sm:%s269]
                  %305 = vst [vmem:[%s277 + $0x34] sm:%s269] %v304
                  %v306 = vld [vmem:[%s276 + $0xa8] sm:%s269]
                  %307 = vst [vmem:[%s277 + $0x38] sm:%s269] %v306
                  %v308 = vld [vmem:[%s276 + $0xb4] sm:%s269]
                  %309 = vst [vmem:[%s277 + $0x3c] sm:%s269] %v308
                  %v310 = vld [vmem:[%s276 + $0xc0] sm:%s269]
                  %311 = vst [vmem:[%s277 + $0x40] sm:%s269] %v310
                  %v312 = vld [vmem:[%s276 + $0xcc] sm:%s269]
                  %313 = vst [vmem:[%s277 + $0x44] sm:%s269] %v312
                  %v314 = vld [vmem:[%s276 + $0xd8] sm:%s269]
                  %315 = vst [vmem:[%s277 + $0x48] sm:%s269] %v314
                  %v316 = vld [vmem:[%s276 + $0xe4] sm:%s269]
                  %317 = vst [vmem:[%s277 + $0x4c] sm:%s269] %v316
                  %v318 = vld [vmem:[%s276 + $0xf0] sm:%s269]
                  %319 = vst [vmem:[%s277 + $0x50] sm:%s269] %v318
                  %v320 = vld [vmem:[%s276 + $0xfc] sm:%s269]
                  %321 = vst [vmem:[%s277 + $0x54] sm:%s269] %v320
                  %v322 = vld [vmem:[%s276 + $0x108] sm:%s269]
                  %323 = vst [vmem:[%s277 + $0x58] sm:%s269] %v322
                  %v324 = vld [vmem:[%s276 + $0x114] sm:%s269]
                  %325 = vst [vmem:[%s277 + $0x5c] sm:%s269] %v324
                  %v326 = vld [vmem:[%s276 + $0x120] sm:%s269]
                  %327 = vst [vmem:[%s277 + $0x60] sm:%s269] %v326
                  %v328 = vld [vmem:[%s276 + $0x12c] sm:%s269]
                  %329 = vst [vmem:[%s277 + $0x64] sm:%s269] %v328
                  %v330 = vld [vmem:[%s276 + $0x138] sm:%s269]
                  %331 = vst [vmem:[%s277 + $0x68] sm:%s269] %v330
                  %v332 = vld [vmem:[%s276 + $0x144] sm:%s269]
                  %333 = vst [vmem:[%s277 + $0x6c] sm:%s269] %v332
                  %v334 = vld [vmem:[%s276 + $0x150] sm:%s269]
                  %335 = vst [vmem:[%s277 + $0x70] sm:%s269] %v334
                  %v336 = vld [vmem:[%s276 + $0x15c] sm:%s269]
                  %337 = vst [vmem:[%s277 + $0x74] sm:%s269] %v336
                  %v338 = vld [vmem:[%s276 + $0x168] sm:%s269]
                  %339 = vst [vmem:[%s277 + $0x78] sm:%s269] %v338
                  %v340 = vld [vmem:[%s276 + $0x174] sm:%s269]
                  %341 = vst [vmem:[%s277 + $0x7c] sm:%s269] %v340
                $region59: #{conv3d_same.1} parent=46 // loop_footer
                  %s275 = sadd.s32 1, %s271
                $region60: #{conv3d_same.1} parent=46 // loop_footer_branch
                  %270 = sbr.rel target = $region56
                $region61: #{conv3d_same.1} parent=46 // loop_exit
                  _
              $region47: #{conv3d_same.1} parent=31 // pred_fallthru
                _
            $region32: #{conv3d_same.1} parent=27 // pred_fallthru
              _
            // Predicated region
            $region33: #{conv3d_same.1} parent=27 // pred_check
              _
            $region34: #{conv3d_same.1} parent=27 // pred_check_branch
              %183 = sbr.rel (0) target = $region36
            $region35: #{conv3d_same.1} parent=27 // pred_region
              %s185 = ssub.s32 16, 1
              loop: start=0, step=1, limit=1
              $region37: #{conv3d_same.1} parent=35 // loop_pre_header
                _
              $region38: #{conv3d_same.1} parent=35 // loop_header
                %s187 = sphi 0, %s191
                %p188 = scmp.ge.s32.totalorder %s187, 1
                %s192 = sphi %s177, %s177
                %s193 = sphi %s172, %s172
              $region39: #{conv3d_same.1} parent=35 // loop_header_branch
                %190 = sbr.rel (%p188) target = $region43
              $region40: #{conv3d_same.1} parent=35 // loop_body
                %v194 = vld [vmem:[%s192] sm:%s185]
                %195 = vst [vmem:[%s193] sm:%s185] %v194
                %v196 = vld [vmem:[%s192 + $0xc] sm:%s185]
                %197 = vst [vmem:[%s193 + $0x4] sm:%s185] %v196
                %v198 = vld [vmem:[%s192 + $0x18] sm:%s185]
                %199 = vst [vmem:[%s193 + $0x8] sm:%s185] %v198
                %v200 = vld [vmem:[%s192 + $0x24] sm:%s185]
                %201 = vst [vmem:[%s193 + $0xc] sm:%s185] %v200
                %v202 = vld [vmem:[%s192 + $0x30] sm:%s185]
                %203 = vst [vmem:[%s193 + $0x10] sm:%s185] %v202
                %v204 = vld [vmem:[%s192 + $0x3c] sm:%s185]
                %205 = vst [vmem:[%s193 + $0x14] sm:%s185] %v204
                %v206 = vld [vmem:[%s192 + $0x48] sm:%s185]
                %207 = vst [vmem:[%s193 + $0x18] sm:%s185] %v206
                %v208 = vld [vmem:[%s192 + $0x54] sm:%s185]
                %209 = vst [vmem:[%s193 + $0x1c] sm:%s185] %v208
                %v210 = vld [vmem:[%s192 + $0x60] sm:%s185]
                %211 = vst [vmem:[%s193 + $0x20] sm:%s185] %v210
                %v212 = vld [vmem:[%s192 + $0x6c] sm:%s185]
                %213 = vst [vmem:[%s193 + $0x24] sm:%s185] %v212
                %v214 = vld [vmem:[%s192 + $0x78] sm:%s185]
                %215 = vst [vmem:[%s193 + $0x28] sm:%s185] %v214
                %v216 = vld [vmem:[%s192 + $0x84] sm:%s185]
                %217 = vst [vmem:[%s193 + $0x2c] sm:%s185] %v216
                %v218 = vld [vmem:[%s192 + $0x90] sm:%s185]
                %219 = vst [vmem:[%s193 + $0x30] sm:%s185] %v218
                %v220 = vld [vmem:[%s192 + $0x9c] sm:%s185]
                %221 = vst [vmem:[%s193 + $0x34] sm:%s185] %v220
                %v222 = vld [vmem:[%s192 + $0xa8] sm:%s185]
                %223 = vst [vmem:[%s193 + $0x38] sm:%s185] %v222
                %v224 = vld [vmem:[%s192 + $0xb4] sm:%s185]
                %225 = vst [vmem:[%s193 + $0x3c] sm:%s185] %v224
                %v226 = vld [vmem:[%s192 + $0xc0] sm:%s185]
                %227 = vst [vmem:[%s193 + $0x40] sm:%s185] %v226
                %v228 = vld [vmem:[%s192 + $0xcc] sm:%s185]
                %229 = vst [vmem:[%s193 + $0x44] sm:%s185] %v228
                %v230 = vld [vmem:[%s192 + $0xd8] sm:%s185]
                %231 = vst [vmem:[%s193 + $0x48] sm:%s185] %v230
                %v232 = vld [vmem:[%s192 + $0xe4] sm:%s185]
                %233 = vst [vmem:[%s193 + $0x4c] sm:%s185] %v232
                %v234 = vld [vmem:[%s192 + $0xf0] sm:%s185]
                %235 = vst [vmem:[%s193 + $0x50] sm:%s185] %v234
                %v236 = vld [vmem:[%s192 + $0xfc] sm:%s185]
                %237 = vst [vmem:[%s193 + $0x54] sm:%s185] %v236
                %v238 = vld [vmem:[%s192 + $0x108] sm:%s185]
                %239 = vst [vmem:[%s193 + $0x58] sm:%s185] %v238
                %v240 = vld [vmem:[%s192 + $0x114] sm:%s185]
                %241 = vst [vmem:[%s193 + $0x5c] sm:%s185] %v240
                %v242 = vld [vmem:[%s192 + $0x120] sm:%s185]
                %243 = vst [vmem:[%s193 + $0x60] sm:%s185] %v242
                %v244 = vld [vmem:[%s192 + $0x12c] sm:%s185]
                %245 = vst [vmem:[%s193 + $0x64] sm:%s185] %v244
                %v246 = vld [vmem:[%s192 + $0x138] sm:%s185]
                %247 = vst [vmem:[%s193 + $0x68] sm:%s185] %v246
                %v248 = vld [vmem:[%s192 + $0x144] sm:%s185]
                %249 = vst [vmem:[%s193 + $0x6c] sm:%s185] %v248
                %v250 = vld [vmem:[%s192 + $0x150] sm:%s185]
                %251 = vst [vmem:[%s193 + $0x70] sm:%s185] %v250
                %v252 = vld [vmem:[%s192 + $0x15c] sm:%s185]
                %253 = vst [vmem:[%s193 + $0x74] sm:%s185] %v252
                %v254 = vld [vmem:[%s192 + $0x168] sm:%s185]
                %255 = vst [vmem:[%s193 + $0x78] sm:%s185] %v254
                %v256 = vld [vmem:[%s192 + $0x174] sm:%s185]
                %257 = vst [vmem:[%s193 + $0x7c] sm:%s185] %v256
              $region41: #{conv3d_same.1} parent=35 // loop_footer
                %s191 = sadd.s32 1, %s187
              $region42: #{conv3d_same.1} parent=35 // loop_footer_branch
                %186 = sbr.rel target = $region38
              $region43: #{conv3d_same.1} parent=35 // loop_exit
                _
            $region36: #{conv3d_same.1} parent=27 // pred_fallthru
              _
          $region28: #{conv3d_same.1} parent=23 // pred_fallthru
            _
          %342 = vnop
        $region24: #{conv3d_same.1} parent=19 // pred_fallthru
          _
        // Predicated region
        $region62: #{conv3d_same.1} parent=19 // pred_check
          %p343 = pneg %p81
        $region63: #{conv3d_same.1} parent=19 // pred_check_branch
          %345 = sbr.rel (%p343) target = $region65
        $region64: #{conv3d_same.1} parent=19 // pred_region
          %s346 = smul.u32 16, %s21
          %p347 = scmp.lt.s32.totalorder %s346, 47
          %s348 = scalar_select %p347, %s346, 47
          %p349 = scmp.lt.s32.totalorder %s20, 0
          %s350 = scalar_select %p349, %s20, 0
          %s351 = sadd.s32 %s350, %s348
          %s352 = smul.addr %s351, 4
          %s353 = scalar_lea.vmem %s1, %s352
          %s354 = smul.u32 16, %s21
        $region65: #{conv3d_same.1} parent=19 // pred_fallthru
          _
      $region20: #{conv3d_same.1} parent=5 // pred_fallthru
        _
      %p355 = scmp.le.s32.totalorder 1, %s12
      %p356 = scmp.lt.s32.totalorder %s12, 97
      %p357 = pnand %p355, %p356
      %p358 = pneg %p357
      // Predicated region
      $region66: #{conv3d_same.1} parent=5 // pred_check
        _
      $region67: #{conv3d_same.1} parent=5 // pred_check_branch
        %360 = sbr.rel (%p357) target = $region69
      $region68: #{conv3d_same.1} parent=5 // pred_region
        %s361 = ssub.s32 %s12, 1
        %s362 = sand.u32 %s46, 1
        %s363 = sand.u32 %s46, 1
        %s364 = smul.addr %s363, 128
        %s365 = scalar_lea.vmem [#allocation3], %s364
        // Predicated region
        $region70: #{conv3d_same.1} parent=68 // pred_check
          %p366 = pneg %p59
        $region71: #{conv3d_same.1} parent=68 // pred_check_branch
          %368 = sbr.rel (%p366) target = $region73
        $region72: #{conv3d_same.1} parent=68 // pred_region
          _
        $region73: #{conv3d_same.1} parent=68 // pred_fallthru
          _
        %s369 = sand.u32 %s46, 1
        %s370 = sand.u32 %s46, 1
        %s371 = smul.addr %s370, 128
        %s372 = scalar_lea.vmem [#allocation3], %s371
        %p373 = pneg %p59
        %p374 = pneg %p56
        %s375 = smul.u32 16, %s24
        %p376 = scmp.lt.s32.totalorder %s375, 47
        %s377 = scalar_select %p376, %s375, 47
        %p378 = scmp.lt.s32.totalorder %s23, 0
        %s379 = scalar_select %p378, %s23, 0
        %s380 = sadd.s32 %s379, %s377
        %s381 = smul.addr %s380, 4
        %s382 = scalar_lea.vmem %s1, %s381
        %p383 = pneg %p87
        %p384 = pneg %p84
        %p385 = scmp.lt.s32.totalorder %s23, 0
        %s386 = scalar_select %p385, %s23, 0
        %s387 = scalar_lea.vmem %s2, %s386
        %p388 = pneg %p113
        %p389 = pneg %p110
        %p390 = pneg %p141
        %p391 = pneg %p138
        %s392 = sand.u32 %s128, 1
        %s393 = scalar_lea.sflag [#allocation5], %s392
        %s394 = sand.u32 %s128, 1
        %s395 = smul.addr %s394, 128
        %s396 = scalar_lea.vmem [#allocation4], %s395
        %s397 = smul.u32 32, %s22
        %s398 = smul.u32 16, %s24
        %p399 = scmp.lt.s32.totalorder %s398, 47
        %s400 = scalar_select %p399, %s398, 47
        %p401 = scmp.lt.s32.totalorder %s23, 0
        %s402 = scalar_select %p401, %s23, 0
        %s403 = sadd.s32 %s402, %s400
        %s404 = smul.addr %s403, 4
        %s405 = scalar_lea.vmem %s1, %s404
        %s406 = smul.u32 16, %s24
        %p407 = scmp.lt.s32.totalorder %s23, 0
        %s408 = scalar_select %p407, %s23, 0
        %s409 = scalar_lea.vmem %s2, %s408
        %s410 = smul.u32 32, %s22
        %p412 = scmp.eq.s32.totalorder %s24, 0
        // Predicated region
        $region74: #{conv3d_same.1} parent=68 // pred_check
          %p413 = pneg %p412
        $region75: #{conv3d_same.1} parent=68 // pred_check_branch
          %415 = sbr.rel (%p413) target = $region77
        $region76: #{conv3d_same.1} parent=68 // pred_region
          %vm416 = vcmask 261120
          %417 = vst.msk [vmem:[#allocation2] sm:$0xff] %vm416, 0.0
          %418 = vst.msk [vmem:[#allocation2 + $0x8] sm:$0xff] %vm416, 0.0
          %419 = vst.msk [vmem:[#allocation2 + $0x10] sm:$0xff] %vm416, 0.0
          %420 = vst.msk [vmem:[#allocation2 + $0x18] sm:$0xff] %vm416, 0.0
          %421 = vst.msk [vmem:[#allocation2 + $0x20] sm:$0xff] %vm416, 0.0
          %422 = vst.msk [vmem:[#allocation2 + $0x28] sm:$0xff] %vm416, 0.0
          %423 = vst.msk [vmem:[#allocation2 + $0x30] sm:$0xff] %vm416, 0.0
          %424 = vst.msk [vmem:[#allocation2 + $0x38] sm:$0xff] %vm416, 0.0
          %425 = vst.msk [vmem:[#allocation2 + $0x40] sm:$0xff] %vm416, 0.0
          %426 = vst.msk [vmem:[#allocation2 + $0x48] sm:$0xff] %vm416, 0.0
          %427 = vst.msk [vmem:[#allocation2 + $0x50] sm:$0xff] %vm416, 0.0
          %428 = vst.msk [vmem:[#allocation2 + $0x58] sm:$0xff] %vm416, 0.0
          %429 = vst.msk [vmem:[#allocation2 + $0x60] sm:$0xff] %vm416, 0.0
          %430 = vst.msk [vmem:[#allocation2 + $0x68] sm:$0xff] %vm416, 0.0
          %431 = vst.msk [vmem:[#allocation2 + $0x70] sm:$0xff] %vm416, 0.0
          %432 = vst.msk [vmem:[#allocation2 + $0x78] sm:$0xff] %vm416, 0.0
          %433 = vst.msk [vmem:[#allocation2 + $0x80] sm:$0xff] %vm416, 0.0
          %434 = vst.msk [vmem:[#allocation2 + $0x88] sm:$0xff] %vm416, 0.0
          %435 = vst.msk [vmem:[#allocation2 + $0x90] sm:$0xff] %vm416, 0.0
          %436 = vst.msk [vmem:[#allocation2 + $0x98] sm:$0xff] %vm416, 0.0
          %437 = vst.msk [vmem:[#allocation2 + $0xa0] sm:$0xff] %vm416, 0.0
          %438 = vst.msk [vmem:[#allocation2 + $0xa8] sm:$0xff] %vm416, 0.0
          %439 = vst.msk [vmem:[#allocation2 + $0xb0] sm:$0xff] %vm416, 0.0
          %440 = vst.msk [vmem:[#allocation2 + $0xb8] sm:$0xff] %vm416, 0.0
          %441 = vst.msk [vmem:[#allocation2 + $0xc0] sm:$0xff] %vm416, 0.0
          %442 = vst.msk [vmem:[#allocation2 + $0xc8] sm:$0xff] %vm416, 0.0
          %443 = vst.msk [vmem:[#allocation2 + $0xd0] sm:$0xff] %vm416, 0.0
          %444 = vst.msk [vmem:[#allocation2 + $0xd8] sm:$0xff] %vm416, 0.0
          %445 = vst.msk [vmem:[#allocation2 + $0xe0] sm:$0xff] %vm416, 0.0
          %446 = vst.msk [vmem:[#allocation2 + $0xe8] sm:$0xff] %vm416, 0.0
          %447 = vst.msk [vmem:[#allocation2 + $0xf0] sm:$0xff] %vm416, 0.0
          %448 = vst.msk [vmem:[#allocation2 + $0xf8] sm:$0xff] %vm416, 0.0
        $region77: #{conv3d_same.1} parent=68 // pred_fallthru
          _
        %v449 = vld [vmem:[#allocation2] sm:$0xff]
        %v450 = vld [vmem:[#allocation2 + $0x8] sm:$0xff]
        %v451 = vld [vmem:[#allocation2 + $0x10] sm:$0xff]
        %v452 = vld [vmem:[#allocation2 + $0x18] sm:$0xff]
        %v453 = vld [vmem:[#allocation2 + $0x20] sm:$0xff]
        %v454 = vld [vmem:[#allocation2 + $0x28] sm:$0xff]
        %v455 = vld [vmem:[#allocation2 + $0x30] sm:$0xff]
        %v456 = vld [vmem:[#allocation2 + $0x38] sm:$0xff]
        %v457 = vld [vmem:[#allocation2 + $0x40] sm:$0xff]
        %v458 = vld [vmem:[#allocation2 + $0x48] sm:$0xff]
        %v459 = vld [vmem:[#allocation2 + $0x50] sm:$0xff]
        %v460 = vld [vmem:[#allocation2 + $0x58] sm:$0xff]
        %v461 = vld [vmem:[#allocation2 + $0x60] sm:$0xff]
        %v462 = vld [vmem:[#allocation2 + $0x68] sm:$0xff]
        %v463 = vld [vmem:[#allocation2 + $0x70] sm:$0xff]
        %v464 = vld [vmem:[#allocation2 + $0x78] sm:$0xff]
        %v465 = vld [vmem:[#allocation2 + $0x80] sm:$0xff]
        %v466 = vld [vmem:[#allocation2 + $0x88] sm:$0xff]
        %v467 = vld [vmem:[#allocation2 + $0x90] sm:$0xff]
        %v468 = vld [vmem:[#allocation2 + $0x98] sm:$0xff]
        %v469 = vld [vmem:[#allocation2 + $0xa0] sm:$0xff]
        %v470 = vld [vmem:[#allocation2 + $0xa8] sm:$0xff]
        %v471 = vld [vmem:[#allocation2 + $0xb0] sm:$0xff]
        %v472 = vld [vmem:[#allocation2 + $0xb8] sm:$0xff]
        %v473 = vld [vmem:[#allocation2 + $0xc0] sm:$0xff]
        %v474 = vld [vmem:[#allocation2 + $0xc8] sm:$0xff]
        %v475 = vld [vmem:[#allocation2 + $0xd0] sm:$0xff]
        %v476 = vld [vmem:[#allocation2 + $0xd8] sm:$0xff]
        %v477 = vld [vmem:[#allocation2 + $0xe0] sm:$0xff]
        %v478 = vld [vmem:[#allocation2 + $0xe8] sm:$0xff]
        %v479 = vld [vmem:[#allocation2 + $0xf0] sm:$0xff]
        %v480 = vld [vmem:[#allocation2 + $0xf8] sm:$0xff]
        %v481 = vld [vmem:[%s365] sm:$0xf]
        %v482 = vld [vmem:[%s365 + $0x4] sm:$0xf]
        %v483 = vld [vmem:[%s365 + $0x8] sm:$0xf]
        %v484 = vld [vmem:[%s365 + $0xc] sm:$0xf]
        %v485 = vld [vmem:[%s365 + $0x10] sm:$0xf]
        %v486 = vld [vmem:[%s365 + $0x14] sm:$0xf]
        %v487 = vld [vmem:[%s365 + $0x18] sm:$0xf]
        %v488 = vld [vmem:[%s365 + $0x1c] sm:$0xf]
        %v489 = vld [vmem:[%s365 + $0x20] sm:$0xf]
        %v490 = vld [vmem:[%s365 + $0x24] sm:$0xf]
        %v491 = vld [vmem:[%s365 + $0x28] sm:$0xf]
        %v492 = vld [vmem:[%s365 + $0x2c] sm:$0xf]
        %v493 = vld [vmem:[%s365 + $0x30] sm:$0xf]
        %v494 = vld [vmem:[%s365 + $0x34] sm:$0xf]
        %v495 = vld [vmem:[%s365 + $0x38] sm:$0xf]
        %v496 = vld [vmem:[%s365 + $0x3c] sm:$0xf]
        %v497 = vld [vmem:[%s365 + $0x40] sm:$0xf]
        %v498 = vld [vmem:[%s365 + $0x44] sm:$0xf]
        %v499 = vld [vmem:[%s365 + $0x48] sm:$0xf]
        %v500 = vld [vmem:[%s365 + $0x4c] sm:$0xf]
        %v501 = vld [vmem:[%s365 + $0x50] sm:$0xf]
        %v502 = vld [vmem:[%s365 + $0x54] sm:$0xf]
        %v503 = vld [vmem:[%s365 + $0x58] sm:$0xf]
        %v504 = vld [vmem:[%s365 + $0x5c] sm:$0xf]
        %v505 = vld [vmem:[%s365 + $0x60] sm:$0xf]
        %v506 = vld [vmem:[%s365 + $0x64] sm:$0xf]
        %v507 = vld [vmem:[%s365 + $0x68] sm:$0xf]
        %v508 = vld [vmem:[%s365 + $0x6c] sm:$0xf]
        %v509 = vld [vmem:[%s365 + $0x70] sm:$0xf]
        %v510 = vld [vmem:[%s365 + $0x74] sm:$0xf]
        %v511 = vld [vmem:[%s365 + $0x78] sm:$0xf]
        %v512 = vld [vmem:[%s365 + $0x7c] sm:$0xf]
        %v513 = vld [vmem:[%s405] sm:$0xf]
        %v514 = vld [vmem:[%s405 + $0x4] sm:$0xf]
        %v515 = vld [vmem:[%s405 + $0x8] sm:$0xf]
        %v516 = vld [vmem:[%s405 + $0xc] sm:$0xf]
        %v517 = vld [vmem:[%s405 + $0x10] sm:$0xf]
        %v518 = vld [vmem:[%s405 + $0x14] sm:$0xf]
        %v519 = vld [vmem:[%s405 + $0x18] sm:$0xf]
        %v520 = vld [vmem:[%s405 + $0x1c] sm:$0xf]
        %v521 = vld [vmem:[%s405 + $0x20] sm:$0xf]
        %v522 = vld [vmem:[%s405 + $0x24] sm:$0xf]
        %v523 = vld [vmem:[%s405 + $0x28] sm:$0xf]
        %v524 = vld [vmem:[%s405 + $0x2c] sm:$0xf]
        %v525 = vld [vmem:[%s405 + $0x30] sm:$0xf]
        %v526 = vld [vmem:[%s405 + $0x34] sm:$0xf]
        %v527 = vld [vmem:[%s405 + $0x38] sm:$0xf]
        %v528 = vld [vmem:[%s405 + $0x3c] sm:$0xf]
        %v561 = vunpack.c.l.b16 %v481
        %v562 = vunpack.c.l.b16 %v482
        %v563 = vunpack.c.l.b16 %v483
        %v564 = vunpack.c.l.b16 %v484
        %v565 = vunpack.c.l.b16 %v485
        %v566 = vunpack.c.l.b16 %v486
        %v567 = vunpack.c.l.b16 %v487
        %v568 = vunpack.c.l.b16 %v488
        %v569 = vunpack.c.l.b16 %v489
        %v570 = vunpack.c.l.b16 %v490
        %v571 = vunpack.c.l.b16 %v491
        %v572 = vunpack.c.l.b16 %v492
        %v573 = vunpack.c.l.b16 %v493
        %v574 = vunpack.c.l.b16 %v494
        %v575 = vunpack.c.l.b16 %v495
        %v576 = vunpack.c.l.b16 %v496
        %v577 = vunpack.c.l.b16 %v497
        %v578 = vunpack.c.l.b16 %v498
        %v579 = vunpack.c.l.b16 %v499
        %v580 = vunpack.c.l.b16 %v500
        %v581 = vunpack.c.l.b16 %v501
        %v582 = vunpack.c.l.b16 %v502
        %v583 = vunpack.c.l.b16 %v503
        %v584 = vunpack.c.l.b16 %v504
        %v585 = vunpack.c.l.b16 %v505
        %v586 = vunpack.c.l.b16 %v506
        %v587 = vunpack.c.l.b16 %v507
        %v588 = vunpack.c.l.b16 %v508
        %v589 = vunpack.c.l.b16 %v509
        %v590 = vunpack.c.l.b16 %v510
        %v591 = vunpack.c.l.b16 %v511
        %v592 = vunpack.c.l.b16 %v512
        %v593 = vpack.c.b16 %v562, %v561
        %v594 = vpack.c.b16 %v564, %v563
        %v595 = vpack.c.b16 %v566, %v565
        %v596 = vpack.c.b16 %v568, %v567
        %v597 = vpack.c.b16 %v570, %v569
        %v598 = vpack.c.b16 %v572, %v571
        %v599 = vpack.c.b16 %v574, %v573
        %v600 = vpack.c.b16 %v576, %v575
        %v601 = vpack.c.b16 %v578, %v577
        %v602 = vpack.c.b16 %v580, %v579
        %v603 = vpack.c.b16 %v582, %v581
        %v604 = vpack.c.b16 %v584, %v583
        %v605 = vpack.c.b16 %v586, %v585
        %v606 = vpack.c.b16 %v588, %v587
        %v607 = vpack.c.b16 %v590, %v589
        %v608 = vpack.c.b16 %v592, %v591
        %v641 = vunpack.c.l.b16 %v513
        %v642 = vunpack.c.l.b16 %v514
        %v643 = vunpack.c.l.b16 %v515
        %v644 = vunpack.c.l.b16 %v516
        %v645 = vunpack.c.l.b16 %v517
        %v646 = vunpack.c.l.b16 %v518
        %v647 = vunpack.c.l.b16 %v519
        %v648 = vunpack.c.l.b16 %v520
        %v649 = vunpack.c.l.b16 %v521
        %v650 = vunpack.c.l.b16 %v522
        %v651 = vunpack.c.l.b16 %v523
        %v652 = vunpack.c.l.b16 %v524
        %v653 = vunpack.c.l.b16 %v525
        %v654 = vunpack.c.l.b16 %v526
        %v655 = vunpack.c.l.b16 %v527
        %v656 = vunpack.c.l.b16 %v528
        %v657 = vpack.c.b16 %v642, %v641
        %v658 = vpack.c.b16 %v644, %v643
        %v659 = vpack.c.b16 %v646, %v645
        %v660 = vpack.c.b16 %v648, %v647
        %v661 = vpack.c.b16 %v650, %v649
        %v662 = vpack.c.b16 %v652, %v651
        %v663 = vpack.c.b16 %v654, %v653
        %v664 = vpack.c.b16 %v656, %v655
        %673 = vmatprep.subr.bf16.mxu0 0
        %674 = vmatpush1.bf16.msra.mxu0 %v664
        %675 = vmatprep.subr.bf16.mxu0 0
        %676 = vmatpush1.bf16.msra.mxu0 %v663
        %677 = vmatprep.subr.bf16.mxu0 0
        %678 = vmatpush1.bf16.msra.mxu0 %v662
        %679 = vmatprep.subr.bf16.mxu0 0
        %680 = vmatpush1.bf16.msra.mxu0 %v661
        %681 = vmatprep.subr.bf16.mxu0 0
        %682 = vmatpush1.bf16.msra.mxu0 %v660
        %683 = vmatprep.subr.bf16.mxu0 0
        %684 = vmatpush1.bf16.msra.mxu0 %v659
        %685 = vmatprep.subr.bf16.mxu0 0
        %686 = vmatpush1.bf16.msra.mxu0 %v658
        %687 = vmatprep.subr.bf16.mxu0 0
        %688 = vmatpush1.bf16.msra.mxu0 %v657
        %689 = vmatprep.subr.bf16.mxu0 0
        %690 = vmatpush2.bf16.msra.mxu0 0
        %691 = vmatprep.subr.bf16.mxu0 0
        %692 = vmatpush2.bf16.msra.mxu0 0
        %693 = vmatprep.subr.bf16.mxu0 0
        %694 = vmatpush2.bf16.msra.mxu0 0
        %695 = vmatprep.subr.bf16.mxu0 0
        %696 = vmatpush2.bf16.msra.mxu0 0
        %697 = vmatprep.subr.bf16.mxu0 0
        %698 = vmatpush2.bf16.msra.mxu0 0
        %699 = vmatprep.subr.bf16.mxu0 0
        %700 = vmatpush2.bf16.msra.mxu0 0
        %701 = vmatprep.subr.bf16.mxu0 0
        %702 = vmatpush2.bf16.msra.mxu0 0
        %703 = vmatprep.subr.bf16.mxu0 0
        %704 = vmatpush2.bf16.msra.mxu0 0
        %705 = vmatprep.mubr.bf16.mxu0 0
        %706 = vmatmul.mubr.bf16.gmra.mxu0 %v593
        %v707 = vpop.f32.mrf.mxu0
        %v708 = vadd.f32 0.0, %v707
        %v709 = vpop.f32.mrf.mxu0
        %v710 = vpop.f32.mrf.mxu0
        %v711 = vadd.f32 0.0, %v710
        %v712 = vpop.f32.mrf.mxu0
        %713 = vmatprep.mubr.bf16.mxu0 0
        %714 = vmatmul.mubr.bf16.gmra.mxu0 %v594
        %v715 = vpop.f32.mrf.mxu0
        %v716 = vadd.f32 0.0, %v715
        %v717 = vpop.f32.mrf.mxu0
        %v718 = vpop.f32.mrf.mxu0
        %v719 = vadd.f32 0.0, %v718
        %v720 = vpop.f32.mrf.mxu0
        %721 = vmatprep.mubr.bf16.mxu0 0
        %722 = vmatmul.mubr.bf16.gmra.mxu0 %v595
        %v723 = vpop.f32.mrf.mxu0
        %v724 = vadd.f32 0.0, %v723
        %v725 = vpop.f32.mrf.mxu0
        %v726 = vpop.f32.mrf.mxu0
        %v727 = vadd.f32 0.0, %v726
        %v728 = vpop.f32.mrf.mxu0
        %729 = vmatprep.mubr.bf16.mxu0 0
        %730 = vmatmul.mubr.bf16.gmra.mxu0 %v596
        %v731 = vpop.f32.mrf.mxu0
        %v732 = vadd.f32 0.0, %v731
        %v733 = vpop.f32.mrf.mxu0
        %v734 = vpop.f32.mrf.mxu0
        %v735 = vadd.f32 0.0, %v734
        %v736 = vpop.f32.mrf.mxu0
        %737 = vmatprep.mubr.bf16.mxu0 0
        %738 = vmatmul.mubr.bf16.gmra.mxu0 %v597
        %v739 = vpop.f32.mrf.mxu0
        %v740 = vadd.f32 0.0, %v739
        %v741 = vpop.f32.mrf.mxu0
        %v742 = vpop.f32.mrf.mxu0
        %v743 = vadd.f32 0.0, %v742
        %v744 = vpop.f32.mrf.mxu0
        %745 = vmatprep.mubr.bf16.mxu0 0
        %746 = vmatmul.mubr.bf16.gmra.mxu0 %v598
        %v747 = vpop.f32.mrf.mxu0
        %v748 = vadd.f32 0.0, %v747
        %v749 = vpop.f32.mrf.mxu0
        %v750 = vpop.f32.mrf.mxu0
        %v751 = vadd.f32 0.0, %v750
        %v752 = vpop.f32.mrf.mxu0
        %753 = vmatprep.mubr.bf16.mxu0 0
        %754 = vmatmul.mubr.bf16.gmra.mxu0 %v599
        %v755 = vpop.f32.mrf.mxu0
        %v756 = vadd.f32 0.0, %v755
        %v757 = vpop.f32.mrf.mxu0
        %v758 = vpop.f32.mrf.mxu0
        %v759 = vadd.f32 0.0, %v758
        %v760 = vpop.f32.mrf.mxu0
        %761 = vmatprep.mubr.bf16.mxu0 0
        %762 = vmatmul.mubr.bf16.gmra.mxu0 %v600
        %v763 = vpop.f32.mrf.mxu0
        %v764 = vadd.f32 0.0, %v763
        %v765 = vpop.f32.mrf.mxu0
        %v766 = vpop.f32.mrf.mxu0
        %v767 = vadd.f32 0.0, %v766
        %v768 = vpop.f32.mrf.mxu0
        %769 = vmatprep.mubr.bf16.mxu0 0
        %770 = vmatmul.mubr.bf16.gmra.mxu0 %v601
        %v771 = vpop.f32.mrf.mxu0
        %v772 = vadd.f32 0.0, %v771
        %v773 = vpop.f32.mrf.mxu0
        %v774 = vpop.f32.mrf.mxu0
        %v775 = vadd.f32 0.0, %v774
        %v776 = vpop.f32.mrf.mxu0
        %777 = vmatprep.mubr.bf16.mxu0 0
        %778 = vmatmul.mubr.bf16.gmra.mxu0 %v602
        %v779 = vpop.f32.mrf.mxu0
        %v780 = vadd.f32 0.0, %v779
        %v781 = vpop.f32.mrf.mxu0
        %v782 = vpop.f32.mrf.mxu0
        %v783 = vadd.f32 0.0, %v782
        %v784 = vpop.f32.mrf.mxu0
        %785 = vmatprep.mubr.bf16.mxu0 0
        %786 = vmatmul.mubr.bf16.gmra.mxu0 %v603
        %v787 = vpop.f32.mrf.mxu0
        %v788 = vadd.f32 0.0, %v787
        %v789 = vpop.f32.mrf.mxu0
        %v790 = vpop.f32.mrf.mxu0
        %v791 = vadd.f32 0.0, %v790
        %v792 = vpop.f32.mrf.mxu0
        %793 = vmatprep.mubr.bf16.mxu0 0
        %794 = vmatmul.mubr.bf16.gmra.mxu0 %v604
        %v795 = vpop.f32.mrf.mxu0
        %v796 = vadd.f32 0.0, %v795
        %v797 = vpop.f32.mrf.mxu0
        %v798 = vpop.f32.mrf.mxu0
        %v799 = vadd.f32 0.0, %v798
        %v800 = vpop.f32.mrf.mxu0
        %801 = vmatprep.mubr.bf16.mxu0 0
        %802 = vmatmul.mubr.bf16.gmra.mxu0 %v605
        %v803 = vpop.f32.mrf.mxu0
        %v804 = vadd.f32 0.0, %v803
        %v805 = vpop.f32.mrf.mxu0
        %v806 = vpop.f32.mrf.mxu0
        %v807 = vadd.f32 0.0, %v806
        %v808 = vpop.f32.mrf.mxu0
        %809 = vmatprep.mubr.bf16.mxu0 0
        %810 = vmatmul.mubr.bf16.gmra.mxu0 %v606
        %v811 = vpop.f32.mrf.mxu0
        %v812 = vadd.f32 0.0, %v811
        %v813 = vpop.f32.mrf.mxu0
        %v814 = vpop.f32.mrf.mxu0
        %v815 = vadd.f32 0.0, %v814
        %v816 = vpop.f32.mrf.mxu0
        %817 = vmatprep.mubr.bf16.mxu0 0
        %818 = vmatmul.mubr.bf16.gmra.mxu0 %v607
        %v819 = vpop.f32.mrf.mxu0
        %v820 = vadd.f32 0.0, %v819
        %v821 = vpop.f32.mrf.mxu0
        %v822 = vpop.f32.mrf.mxu0
        %v823 = vadd.f32 0.0, %v822
        %v824 = vpop.f32.mrf.mxu0
        %825 = vmatprep.mubr.bf16.mxu0 0
        %826 = vmatmul.mubr.bf16.gmra.mxu0 %v608
        %v827 = vpop.f32.mrf.mxu0
        %v828 = vadd.f32 0.0, %v827
        %v829 = vpop.f32.mrf.mxu0
        %v830 = vpop.f32.mrf.mxu0
        %v831 = vadd.f32 0.0, %v830
        %v832 = vpop.f32.mrf.mxu0
        %833 = vdwg.mxu0
        %v834 = vadd.f32 %v449, %v708
        %v835 = vadd.f32 %v450, %v711
        %v836 = vadd.f32 %v451, %v716
        %v837 = vadd.f32 %v452, %v719
        %v838 = vadd.f32 %v453, %v724
        %v839 = vadd.f32 %v454, %v727
        %v840 = vadd.f32 %v455, %v732
        %v841 = vadd.f32 %v456, %v735
        %v842 = vadd.f32 %v457, %v740
        %v843 = vadd.f32 %v458, %v743
        %v844 = vadd.f32 %v459, %v748
        %v845 = vadd.f32 %v460, %v751
        %v846 = vadd.f32 %v461, %v756
        %v847 = vadd.f32 %v462, %v759
        %v848 = vadd.f32 %v463, %v764
        %v849 = vadd.f32 %v464, %v767
        %v850 = vadd.f32 %v465, %v772
        %v851 = vadd.f32 %v466, %v775
        %v852 = vadd.f32 %v467, %v780
        %v853 = vadd.f32 %v468, %v783
        %v854 = vadd.f32 %v469, %v788
        %v855 = vadd.f32 %v470, %v791
        %v856 = vadd.f32 %v471, %v796
        %v857 = vadd.f32 %v472, %v799
        %v858 = vadd.f32 %v473, %v804
        %v859 = vadd.f32 %v474, %v807
        %v860 = vadd.f32 %v475, %v812
        %v861 = vadd.f32 %v476, %v815
        %v862 = vadd.f32 %v477, %v820
        %v863 = vadd.f32 %v478, %v823
        %v864 = vadd.f32 %v479, %v828
        %v865 = vadd.f32 %v480, %v831
        %vm866 = vcmask 261120
        %867 = vst.msk [vmem:[#allocation2] sm:$0xff] %vm866, %v834
        %868 = vst.msk [vmem:[#allocation2 + $0x8] sm:$0xff] %vm866, %v835
        %869 = vst.msk [vmem:[#allocation2 + $0x10] sm:$0xff] %vm866, %v836
        %870 = vst.msk [vmem:[#allocation2 + $0x18] sm:$0xff] %vm866, %v837
        %871 = vst.msk [vmem:[#allocation2 + $0x20] sm:$0xff] %vm866, %v838
        %872 = vst.msk [vmem:[#allocation2 + $0x28] sm:$0xff] %vm866, %v839
        %873 = vst.msk [vmem:[#allocation2 + $0x30] sm:$0xff] %vm866, %v840
        %874 = vst.msk [vmem:[#allocation2 + $0x38] sm:$0xff] %vm866, %v841
        %875 = vst.msk [vmem:[#allocation2 + $0x40] sm:$0xff] %vm866, %v842
        %876 = vst.msk [vmem:[#allocation2 + $0x48] sm:$0xff] %vm866, %v843
        %877 = vst.msk [vmem:[#allocation2 + $0x50] sm:$0xff] %vm866, %v844
        %878 = vst.msk [vmem:[#allocation2 + $0x58] sm:$0xff] %vm866, %v845
        %879 = vst.msk [vmem:[#allocation2 + $0x60] sm:$0xff] %vm866, %v846
        %880 = vst.msk [vmem:[#allocation2 + $0x68] sm:$0xff] %vm866, %v847
        %881 = vst.msk [vmem:[#allocation2 + $0x70] sm:$0xff] %vm866, %v848
        %882 = vst.msk [vmem:[#allocation2 + $0x78] sm:$0xff] %vm866, %v849
        %883 = vst.msk [vmem:[#allocation2 + $0x80] sm:$0xff] %vm866, %v850
        %884 = vst.msk [vmem:[#allocation2 + $0x88] sm:$0xff] %vm866, %v851
        %885 = vst.msk [vmem:[#allocation2 + $0x90] sm:$0xff] %vm866, %v852
        %886 = vst.msk [vmem:[#allocation2 + $0x98] sm:$0xff] %vm866, %v853
        %887 = vst.msk [vmem:[#allocation2 + $0xa0] sm:$0xff] %vm866, %v854
        %888 = vst.msk [vmem:[#allocation2 + $0xa8] sm:$0xff] %vm866, %v855
        %889 = vst.msk [vmem:[#allocation2 + $0xb0] sm:$0xff] %vm866, %v856
        %890 = vst.msk [vmem:[#allocation2 + $0xb8] sm:$0xff] %vm866, %v857
        %891 = vst.msk [vmem:[#allocation2 + $0xc0] sm:$0xff] %vm866, %v858
        %892 = vst.msk [vmem:[#allocation2 + $0xc8] sm:$0xff] %vm866, %v859
        %893 = vst.msk [vmem:[#allocation2 + $0xd0] sm:$0xff] %vm866, %v860
        %894 = vst.msk [vmem:[#allocation2 + $0xd8] sm:$0xff] %vm866, %v861
        %895 = vst.msk [vmem:[#allocation2 + $0xe0] sm:$0xff] %vm866, %v862
        %896 = vst.msk [vmem:[#allocation2 + $0xe8] sm:$0xff] %vm866, %v863
        %897 = vst.msk [vmem:[#allocation2 + $0xf0] sm:$0xff] %vm866, %v864
        %898 = vst.msk [vmem:[#allocation2 + $0xf8] sm:$0xff] %vm866, %v865
        %p899 = scmp.eq.s32.totalorder %s24, 2
        // Predicated region
        $region78: #{conv3d_same.1} parent=68 // pred_check
          %p900 = pneg %p899
        $region79: #{conv3d_same.1} parent=68 // pred_check_branch
          %902 = sbr.rel (%p900) target = $region81
        $region80: #{conv3d_same.1} parent=68 // pred_region
          %v903 = vld [vmem:[#allocation2] sm:$0xff]
          %v904 = vld [vmem:[#allocation2 + $0x8] sm:$0xff]
          %v905 = vld [vmem:[#allocation2 + $0x10] sm:$0xff]
          %v906 = vld [vmem:[#allocation2 + $0x18] sm:$0xff]
          %v907 = vld [vmem:[#allocation2 + $0x20] sm:$0xff]
          %v908 = vld [vmem:[#allocation2 + $0x28] sm:$0xff]
          %v909 = vld [vmem:[#allocation2 + $0x30] sm:$0xff]
          %v910 = vld [vmem:[#allocation2 + $0x38] sm:$0xff]
          %v911 = vld [vmem:[#allocation2 + $0x40] sm:$0xff]
          %v912 = vld [vmem:[#allocation2 + $0x48] sm:$0xff]
          %v913 = vld [vmem:[#allocation2 + $0x50] sm:$0xff]
          %v914 = vld [vmem:[#allocation2 + $0x58] sm:$0xff]
          %v915 = vld [vmem:[#allocation2 + $0x60] sm:$0xff]
          %v916 = vld [vmem:[#allocation2 + $0x68] sm:$0xff]
          %v917 = vld [vmem:[#allocation2 + $0x70] sm:$0xff]
          %v918 = vld [vmem:[#allocation2 + $0x78] sm:$0xff]
          %v919 = vld [vmem:[#allocation2 + $0x80] sm:$0xff]
          %v920 = vld [vmem:[#allocation2 + $0x88] sm:$0xff]
          %v921 = vld [vmem:[#allocation2 + $0x90] sm:$0xff]
          %v922 = vld [vmem:[#allocation2 + $0x98] sm:$0xff]
          %v923 = vld [vmem:[#allocation2 + $0xa0] sm:$0xff]
          %v924 = vld [vmem:[#allocation2 + $0xa8] sm:$0xff]
          %v925 = vld [vmem:[#allocation2 + $0xb0] sm:$0xff]
          %v926 = vld [vmem:[#allocation2 + $0xb8] sm:$0xff]
          %v927 = vld [vmem:[#allocation2 + $0xc0] sm:$0xff]
          %v928 = vld [vmem:[#allocation2 + $0xc8] sm:$0xff]
          %v929 = vld [vmem:[#allocation2 + $0xd0] sm:$0xff]
          %v930 = vld [vmem:[#allocation2 + $0xd8] sm:$0xff]
          %v931 = vld [vmem:[#allocation2 + $0xe0] sm:$0xff]
          %v932 = vld [vmem:[#allocation2 + $0xe8] sm:$0xff]
          %v933 = vld [vmem:[#allocation2 + $0xf0] sm:$0xff]
          %v934 = vld [vmem:[#allocation2 + $0xf8] sm:$0xff]
          %v935 = vld [vmem:[%s409] sm:$0x1]
          %v937 = vlaneseq
          %v938 = vshrl.u32 %v937, 7
          %v939 = vsub.s32 0, %v938
          %v940 = vrot.slane %v935, %v939
          %v942 = vadd.f32 %v903, %v940
          %v943 = vadd.f32 %v904, %v940
          %v944 = vadd.f32 %v905, %v940
          %v945 = vadd.f32 %v906, %v940
          %v946 = vadd.f32 %v907, %v940
          %v947 = vadd.f32 %v908, %v940
          %v948 = vadd.f32 %v909, %v940
          %v949 = vadd.f32 %v910, %v940
          %v950 = vadd.f32 %v911, %v940
          %v951 = vadd.f32 %v912, %v940
          %v952 = vadd.f32 %v913, %v940
          %v953 = vadd.f32 %v914, %v940
          %v954 = vadd.f32 %v915, %v940
          %v955 = vadd.f32 %v916, %v940
          %v956 = vadd.f32 %v917, %v940
          %v957 = vadd.f32 %v918, %v940
          %v958 = vadd.f32 %v919, %v940
          %v959 = vadd.f32 %v920, %v940
          %v960 = vadd.f32 %v921, %v940
          %v961 = vadd.f32 %v922, %v940
          %v962 = vadd.f32 %v923, %v940
          %v963 = vadd.f32 %v924, %v940
          %v964 = vadd.f32 %v925, %v940
          %v965 = vadd.f32 %v926, %v940
          %v966 = vadd.f32 %v927, %v940
          %v967 = vadd.f32 %v928, %v940
          %v968 = vadd.f32 %v929, %v940
          %v969 = vadd.f32 %v930, %v940
          %v970 = vadd.f32 %v931, %v940
          %v971 = vadd.f32 %v932, %v940
          %v972 = vadd.f32 %v933, %v940
          %v973 = vadd.f32 %v934, %v940
          %v974 = vpack.c.bf16 %v943, %v942
          %v975 = vpack.c.bf16 %v945, %v944
          %v976 = vpack.c.bf16 %v947, %v946
          %v977 = vpack.c.bf16 %v949, %v948
          %v978 = vpack.c.bf16 %v951, %v950
          %v979 = vpack.c.bf16 %v953, %v952
          %v980 = vpack.c.bf16 %v955, %v954
          %v981 = vpack.c.bf16 %v957, %v956
          %v982 = vpack.c.bf16 %v959, %v958
          %v983 = vpack.c.bf16 %v961, %v960
          %v984 = vpack.c.bf16 %v963, %v962
          %v985 = vpack.c.bf16 %v965, %v964
          %v986 = vpack.c.bf16 %v967, %v966
          %v987 = vpack.c.bf16 %v969, %v968
          %v988 = vpack.c.bf16 %v971, %v970
          %v989 = vpack.c.bf16 %v973, %v972
          %v1006 = vunpack.c.l.b16 %v974
          %v1007 = vunpack.c.h.b16 %v974
          %v1008 = vunpack.c.l.b16 %v975
          %v1009 = vunpack.c.h.b16 %v975
          %v1010 = vunpack.c.l.b16 %v976
          %v1011 = vunpack.c.h.b16 %v976
          %v1012 = vunpack.c.l.b16 %v977
          %v1013 = vunpack.c.h.b16 %v977
          %v1014 = vunpack.c.l.b16 %v978
          %v1015 = vunpack.c.h.b16 %v978
          %v1016 = vunpack.c.l.b16 %v979
          %v1017 = vunpack.c.h.b16 %v979
          %v1018 = vunpack.c.l.b16 %v980
          %v1019 = vunpack.c.h.b16 %v980
          %v1020 = vunpack.c.l.b16 %v981
          %v1021 = vunpack.c.h.b16 %v981
          %v1022 = vunpack.c.l.b16 %v982
          %v1023 = vunpack.c.h.b16 %v982
          %v1024 = vunpack.c.l.b16 %v983
          %v1025 = vunpack.c.h.b16 %v983
          %v1026 = vunpack.c.l.b16 %v984
          %v1027 = vunpack.c.h.b16 %v984
          %v1028 = vunpack.c.l.b16 %v985
          %v1029 = vunpack.c.h.b16 %v985
          %v1030 = vunpack.c.l.b16 %v986
          %v1031 = vunpack.c.h.b16 %v986
          %v1032 = vunpack.c.l.b16 %v987
          %v1033 = vunpack.c.h.b16 %v987
          %v1034 = vunpack.c.l.b16 %v988
          %v1035 = vunpack.c.h.b16 %v988
          %v1036 = vunpack.c.l.b16 %v989
          %v1037 = vunpack.c.h.b16 %v989
          %v1038 = vpack.c.b16 %v1006, %v1006
          %v1039 = vpack.c.b16 %v1007, %v1007
          %v1040 = vpack.c.b16 %v1008, %v1008
          %v1041 = vpack.c.b16 %v1009, %v1009
          %v1042 = vpack.c.b16 %v1010, %v1010
          %v1043 = vpack.c.b16 %v1011, %v1011
          %v1044 = vpack.c.b16 %v1012, %v1012
          %v1045 = vpack.c.b16 %v1013, %v1013
          %v1046 = vpack.c.b16 %v1014, %v1014
          %v1047 = vpack.c.b16 %v1015, %v1015
          %v1048 = vpack.c.b16 %v1016, %v1016
          %v1049 = vpack.c.b16 %v1017, %v1017
          %v1050 = vpack.c.b16 %v1018, %v1018
          %v1051 = vpack.c.b16 %v1019, %v1019
          %v1052 = vpack.c.b16 %v1020, %v1020
          %v1053 = vpack.c.b16 %v1021, %v1021
          %v1054 = vpack.c.b16 %v1022, %v1022
          %v1055 = vpack.c.b16 %v1023, %v1023
          %v1056 = vpack.c.b16 %v1024, %v1024
          %v1057 = vpack.c.b16 %v1025, %v1025
          %v1058 = vpack.c.b16 %v1026, %v1026
          %v1059 = vpack.c.b16 %v1027, %v1027
          %v1060 = vpack.c.b16 %v1028, %v1028
          %v1061 = vpack.c.b16 %v1029, %v1029
          %v1062 = vpack.c.b16 %v1030, %v1030
          %v1063 = vpack.c.b16 %v1031, %v1031
          %v1064 = vpack.c.b16 %v1032, %v1032
          %v1065 = vpack.c.b16 %v1033, %v1033
          %v1066 = vpack.c.b16 %v1034, %v1034
          %v1067 = vpack.c.b16 %v1035, %v1035
          %v1068 = vpack.c.b16 %v1036, %v1036
          %v1069 = vpack.c.b16 %v1037, %v1037
          %vm1102 = vcmask 257024
          %1103 = vst.msk [vmem:[%s396] sm:$0xf] %vm1102, %v1038
          %1104 = vst.msk [vmem:[%s396 + $0x4] sm:$0xf] %vm1102, %v1039
          %1105 = vst.msk [vmem:[%s396 + $0x8] sm:$0xf] %vm1102, %v1040
          %1106 = vst.msk [vmem:[%s396 + $0xc] sm:$0xf] %vm1102, %v1041
          %1107 = vst.msk [vmem:[%s396 + $0x10] sm:$0xf] %vm1102, %v1042
          %1108 = vst.msk [vmem:[%s396 + $0x14] sm:$0xf] %vm1102, %v1043
          %1109 = vst.msk [vmem:[%s396 + $0x18] sm:$0xf] %vm1102, %v1044
          %1110 = vst.msk [vmem:[%s396 + $0x1c] sm:$0xf] %vm1102, %v1045
          %1111 = vst.msk [vmem:[%s396 + $0x20] sm:$0xf] %vm1102, %v1046
          %1112 = vst.msk [vmem:[%s396 + $0x24] sm:$0xf] %vm1102, %v1047
          %1113 = vst.msk [vmem:[%s396 + $0x28] sm:$0xf] %vm1102, %v1048
          %1114 = vst.msk [vmem:[%s396 + $0x2c] sm:$0xf] %vm1102, %v1049
          %1115 = vst.msk [vmem:[%s396 + $0x30] sm:$0xf] %vm1102, %v1050
          %1116 = vst.msk [vmem:[%s396 + $0x34] sm:$0xf] %vm1102, %v1051
          %1117 = vst.msk [vmem:[%s396 + $0x38] sm:$0xf] %vm1102, %v1052
          %1118 = vst.msk [vmem:[%s396 + $0x3c] sm:$0xf] %vm1102, %v1053
          %1119 = vst.msk [vmem:[%s396 + $0x40] sm:$0xf] %vm1102, %v1054
          %1120 = vst.msk [vmem:[%s396 + $0x44] sm:$0xf] %vm1102, %v1055
          %1121 = vst.msk [vmem:[%s396 + $0x48] sm:$0xf] %vm1102, %v1056
          %1122 = vst.msk [vmem:[%s396 + $0x4c] sm:$0xf] %vm1102, %v1057
          %1123 = vst.msk [vmem:[%s396 + $0x50] sm:$0xf] %vm1102, %v1058
          %1124 = vst.msk [vmem:[%s396 + $0x54] sm:$0xf] %vm1102, %v1059
          %1125 = vst.msk [vmem:[%s396 + $0x58] sm:$0xf] %vm1102, %v1060
          %1126 = vst.msk [vmem:[%s396 + $0x5c] sm:$0xf] %vm1102, %v1061
          %1127 = vst.msk [vmem:[%s396 + $0x60] sm:$0xf] %vm1102, %v1062
          %1128 = vst.msk [vmem:[%s396 + $0x64] sm:$0xf] %vm1102, %v1063
          %1129 = vst.msk [vmem:[%s396 + $0x68] sm:$0xf] %vm1102, %v1064
          %1130 = vst.msk [vmem:[%s396 + $0x6c] sm:$0xf] %vm1102, %v1065
          %1131 = vst.msk [vmem:[%s396 + $0x70] sm:$0xf] %vm1102, %v1066
          %1132 = vst.msk [vmem:[%s396 + $0x74] sm:$0xf] %vm1102, %v1067
          %1133 = vst.msk [vmem:[%s396 + $0x78] sm:$0xf] %vm1102, %v1068
          %1134 = vst.msk [vmem:[%s396 + $0x7c] sm:$0xf] %vm1102, %v1069
        $region81: #{conv3d_same.1} parent=68 // pred_fallthru
          _
        %s1135 = sand.u32 %s128, 1
        %s1136 = scalar_lea.sflag [#allocation5], %s1135
        %s1137 = sand.u32 %s128, 1
        %s1138 = smul.addr %s1137, 128
        %s1139 = scalar_lea.vmem [#allocation4], %s1138
        // Predicated region
        $region82: #{conv3d_same.1} parent=68 // pred_check
          %p1140 = pneg %p138
        $region83: #{conv3d_same.1} parent=68 // pred_check_branch
          %1142 = sbr.rel (%p1140) target = $region85
        $region84: #{conv3d_same.1} parent=68 // pred_region
          %s1143 = smul.u32 32, %s22
          %s1145 = ssub.s32 2048, 2048
          %1146 = vsyncadd %s1136, %s1145
          %s1147 = sadd.s32 %s23, %s1143
          %s1148 = smul.addr %s1147, 64
          %s1149 = scalar_lea.hbm %s3, %s1148
          %s1150 = sshll.u32 %s1139, 4
          %s1151 = int_to_ptr.vmem [resolvable:$true] %s1150
          %1156 = dma.vmem_to_hbm [thread:$0]  %s1151, 2048, %s1149, %s1136, 64, 64, 4
        $region85: #{conv3d_same.1} parent=68 // pred_fallthru
          _
      $region69: #{conv3d_same.1} parent=5 // pred_fallthru
        _
      %p1157 = scmp.le.s32.totalorder 2, %s12
      // Predicated region
      $region86: #{conv3d_same.1} parent=5 // pred_check
        %p1158 = pneg %p1157
      $region87: #{conv3d_same.1} parent=5 // pred_check_branch
        %1160 = sbr.rel (%p1158) target = $region89
      $region88: #{conv3d_same.1} parent=5 // pred_region
        %s1161 = ssub.s32 %s12, 2
        // Predicated region
        $region90: #{conv3d_same.1} parent=88 // pred_check
          %p1162 = pneg %p144
        $region91: #{conv3d_same.1} parent=88 // pred_check_branch
          %1164 = sbr.rel (%p1162) target = $region93
        $region92: #{conv3d_same.1} parent=88 // pred_region
          %s1165 = sand.u32 %s129, 1
          %s1166 = scalar_lea.sflag [#allocation5], %s1165
          %s1167 = sand.u32 %s129, 1
          %s1168 = smul.addr %s1167, 128
          %s1169 = scalar_lea.vmem [#allocation4], %s1168
          %1170 = dma.done %s1166, 2048
        $region93: #{conv3d_same.1} parent=88 // pred_fallthru
          _
      $region89: #{conv3d_same.1} parent=5 // pred_fallthru
        _
    $region6: #{conv3d_same.1} parent=1 // loop_footer
      %s16 = sadd.s32 1, %s12
    $region7: #{conv3d_same.1} parent=1 // loop_footer_branch
      %11 = sbr.rel target = $region3
    $region8: #{conv3d_same.1} parent=1 // loop_exit
      _
    %1171 = vsyncpa [#allocation5], 1
    %s1172 = scalar_lea.sflag [#allocation5], 1
    %1173 = vsyncpa %s1172, 1

</llo_original>
